<compile_context>
chip_gen: v5e
topology: v5e:2x2
jax: 0.10.0
libtpu: 0.0.40
codegen_flags: <defaults>
</compile_context>

<pallas_src>
import functools

import jax
import jax.numpy as jnp
from jax.experimental import pallas as pl
from jax.experimental.pallas import tpu as pltpu


def _round_up(x, m):
    return ((x + m - 1) // m) * m


def _tensorcores_per_device():
    """TensorCores a 'parallel' grid axis can shard over (2 on v7x, else 1)."""
    try:
        kind = jax.devices()[0].device_kind.lower()
    except Exception:  # pragma: no cover - non-TPU / init failure
        return 1
    return 2 if "v7" in kind else 1


def _pick_tb(batch, seq, *, max_rows=256):
    """Samples per grid step.

    Target: one grid step per TensorCore (grid == num cores) while keeping the
    main matmul's row count TB*N at or below ~256 (fills the v6e/v7x MXU).
    """
    n_cores = _tensorcores_per_device()
    best = 1
    for d in range(1, batch + 1):
        if batch % d:
            continue
        if d * seq > max_rows:
            continue
        if n_cores > 1 and (batch // d) % n_cores != 0:
            # keep the parallel batch axis an exact multiple of the core count
            continue
        best = max(best, d)
    return best


def _gat_layer_kernel(x_ref, adj_ref, waug_ref, o_ref, *, alpha, f_out):
    """One grid step = TB graph samples.

    x_ref:    (TB, N, F_in)   node features (bf16)
    adj_ref:  (TB, N, N)      adjacency (f32)
    waug_ref: (F_in, P)       [W^T | W^T a1 | W^T a2 | 0-pad], P = roundup(F_out+2, 128)
    o_ref:    (TB, N, P)      lane-padded output; cols [:F_out] hold h_prime
    """
    tb, seq, f_in = x_ref.shape
    p = waug_ref.shape[-1]

    x = x_ref[...]             # (TB, N, F_in) bf16
    w_aug = waug_ref[...]      # (F_in, P)     bf16

    # One MXU matmul produces h, s1 = a1.h and s2 = a2.h at once
    # (a1/a2 folded into W_aug); f32 accumulation.
    if seq % 8 == 0:
        hall = jnp.dot(x.reshape(tb * seq, f_in), w_aug,
                       preferred_element_type=jnp.float32)
        hall = hall.reshape(tb, seq, p)           # (TB, N, P) f32
    else:
        hall = jnp.einsum("bnf,fp->bnp", x, w_aug,
                          preferred_element_type=jnp.float32)

    # e[b, i, j] = s1[b, i] + s2[b, j], with s1 = hall[..., f_out] and
    # s2 = hall[..., f_out+1].  Build it as ONE batched matmul from
    # lane-selector masks of hall (no narrow lane slices, no separate add):
    #   lhs = [0...0, s1, 1, 0...0],  rhs = [0...0, 1, s2, 0...0]
    lane = jax.lax.broadcasted_iota(jnp.int32, (1, 1, p), 2)
    sel1 = (lane == f_out).astype(jnp.float32)
    sel2 = (lane == f_out + 1).astype(jnp.float32)
    lhs = hall * sel1 + sel2
    rhs = sel1 + hall * sel2
    e = jnp.einsum("bip,bjp->bij", lhs, rhs,
                   preferred_element_type=jnp.float32)   # (TB, N, N)

    e = jnp.maximum(e, alpha * e)                        # LeakyReLU (alpha < 1)
    e = jnp.where(adj_ref[...] > 0, e, -9e15)            # adjacency mask

    # Row softmax over j.
    m = jnp.max(e, axis=-1, keepdims=True)
    pexp = jnp.exp(e - m)
    denom = jnp.sum(pexp, axis=-1, keepdims=True)
    attn = pexp * pl.reciprocal(denom, approx=True)
    # TODO(synk): dropout(attention) skipped (identity, eval mode).

    # h_prime = attention @ h, computed against the full 128-lane hall so the
    # store is an unmasked full-lane vst; wrapper slices [..., :F_out].
    o_ref[...] = jnp.einsum("bij,bjp->bip", attn, hall,
                            preferred_element_type=jnp.float32)


def gat_layer_forward(x, adj, w_weight, a_weight, *, alpha=0.2, tb=None):
    """Pallas forward for GATLayer.

    x:        (B, N, F_in)   node features
    adj:      (B, N, N)      adjacency matrix (mask where <= 0)
    w_weight: (F_out, F_in)  nn.Linear(in_features, out_features, bias=False).weight
    a_weight: (1, 2*F_out)   nn.Linear(2*out_features, 1, bias=False).weight
    """
    batch, seq, f_in = x.shape
    f_out = w_weight.shape[0]
    if tb is None:
        tb = _pick_tb(batch, seq)
    assert batch % tb == 0, (batch, tb)

    # Augmented weight: [W^T | W^T a1 | W^T a2 | 0-pad to a multiple of 128
    # lanes] so the fused matmul output tile (and the kernel output) is
    # lane-dense.
    p = _round_up(f_out + 2, 128)
    w_t = jnp.transpose(w_weight).astype(jnp.float32)      # (F_in, F_out)
    a1 = a_weight[0, :f_out].astype(jnp.float32)            # acts on h_i
    a2 = a_weight[0, f_out:].astype(jnp.float32)            # acts on h_j
    w_aug = jnp.zeros((f_in, p), jnp.float32)
    w_aug = w_aug.at[:, :f_out].set(w_t)
    w_aug = w_aug.at[:, f_out].set(w_t @ a1)
    w_aug = w_aug.at[:, f_out + 1].set(w_t @ a2)

    kernel = functools.partial(_gat_layer_kernel, alpha=alpha, f_out=f_out)
    out_padded = pl.pallas_call(
        kernel,
        out_shape=jax.ShapeDtypeStruct((batch, seq, p), jnp.float32),
        grid_spec=pltpu.PrefetchScalarGridSpec(
            num_scalar_prefetch=0,
            grid=(batch // tb,),
            in_specs=[
                pl.BlockSpec((tb, seq, f_in), lambda b: (b, 0, 0)),   # x (bf16)
                pl.BlockSpec((tb, seq, seq), lambda b: (b, 0, 0)),    # adj
                pl.BlockSpec((f_in, p), lambda b: (0, 0)),            # W_aug (bf16)
            ],
            out_specs=pl.BlockSpec((tb, seq, p), lambda b: (b, 0, 0)),
        ),
        compiler_params=pltpu.CompilerParams(
            dimension_semantics=("parallel",),
            vmem_limit_bytes=32 * 1024 * 1024,
        ),
    )(x.astype(jnp.bfloat16), adj.astype(jnp.float32), w_aug.astype(jnp.bfloat16))
    return out_padded[..., :f_out]


def gat_layer_reference(x, adj, w_weight, a_weight, alpha=0.2):
    """Pure-JAX reference matching the PyTorch GATLayer forward (eval mode)."""
    h = jnp.einsum("bnf,of->bno", x, w_weight)
    f_out = w_weight.shape[0]
    a1 = a_weight[0, :f_out]
    a2 = a_weight[0, f_out:]
    s1 = jnp.einsum("bno,o->bn", h, a1)
    s2 = jnp.einsum("bno,o->bn", h, a2)
    e = s1[:, :, None] + s2[:, None, :]
    e = jnp.where(e > 0, e, alpha * e)
    e = jnp.where(adj > 0, e, -9e15)
    attn = jax.nn.softmax(e, axis=-1)
    return jnp.einsum("bij,bjf->bif", attn, h)


if __name__ == "__main__":
    B, N, F_IN, F_OUT = 32, 8, 32, 32

    key = jax.random.PRNGKey(0)
    kx, kadj, kw, ka = jax.random.split(key, 4)
    x = jax.random.normal(kx, (B, N, F_IN), jnp.float32)
    adj = (jax.random.uniform(kadj, (B, N, N)) > 0.3).astype(jnp.float32)
    adj = jnp.maximum(adj, jnp.eye(N, dtype=jnp.float32)[None, :, :])  # self-loops
    w_weight = 0.02 * jax.random.normal(kw, (F_OUT, F_IN), jnp.float32)   # (out, in)
    a_weight = 0.02 * jax.random.normal(ka, (1, 2 * F_OUT), jnp.float32)  # (1, 2*out)

    out = gat_layer_forward(x, adj, w_weight, a_weight)
    jax.block_until_ready(out)
    assert out.shape == (B, N, F_OUT) and out.dtype == jnp.float32

    ref = gat_layer_reference(x, adj, w_weight, a_weight)
    max_err = float(jnp.max(jnp.abs(out - ref)))
    assert bool(jnp.allclose(out, ref, rtol=5e-3, atol=5e-3)), max_err

    print("KERNEL_OK")
</pallas_src>

<mosaic_0001>
module attributes {stable_mosaic.version = 11 : i64} {
  func.func @_gat_layer_kernel(%arg0: i32, %arg1: memref<32x8x32xbf16, #tpu.memory_space<vmem>>, %arg2: memref<32x8x8xf32, #tpu.memory_space<vmem>>, %arg3: memref<32x128xbf16, #tpu.memory_space<vmem>>, %arg4: memref<32x8x128xf32, #tpu.memory_space<vmem>>) attributes {dimension_semantics = [#tpu.dimension_semantics<parallel>], iteration_bounds = array<i64: 1>, scalar_prefetch = 0 : i64, scratch_operands = 0 : i64, tpu.core_type = #tpu.core_type<tc>, window_params = [{transform_indices = @transform_0, window_bounds = array<i64: 32, 8, 32>}, {transform_indices = @transform_1, window_bounds = array<i64: 32, 8, 8>}, {pipeline_mode = #tpu.pipeline_mode<synchronous>, transform_indices = @transform_2, window_bounds = array<i64: 32, 128>}, {transform_indices = @transform_3, window_bounds = array<i64: 32, 8, 128>}]} {
    %c0 = arith.constant 0 : index
    %c0_0 = arith.constant 0 : index
    %c0_1 = arith.constant 0 : index
    %0 = vector.load %arg1[%c0, %c0_0, %c0_1] : memref<32x8x32xbf16, #tpu.memory_space<vmem>>, vector<32x8x32xbf16>
    %c0_2 = arith.constant 0 : index
    %c0_3 = arith.constant 0 : index
    %1 = vector.load %arg3[%c0_2, %c0_3] : memref<32x128xbf16, #tpu.memory_space<vmem>>, vector<32x128xbf16>
    %2 = vector.shape_cast %0 : vector<32x8x32xbf16> to vector<256x32xbf16>
    %cst = arith.constant dense<0.000000e+00> : vector<256x128xf32>
    %3 = tpu.matmul %2, %1, %cst {dimension_numbers = #tpu.dot_dimension_numbers<[1], [0], [0], [1], [0, 0, 1, 1], [], []>} : vector<256x32xbf16>, vector<32x128xbf16>, vector<256x128xf32> -> vector<256x128xf32>
    %4 = vector.shape_cast %3 : vector<256x128xf32> to vector<32x8x128xf32>
    %5 = tpu.iota {dimensions = array<i32: 2>} : vector<1x1x128xi32>
    %c32_i32 = arith.constant 32 : i32
    %6 = vector.broadcast %c32_i32 : i32 to vector<1x1x128xi32>
    %7 = arith.cmpi eq, %5, %6 : vector<1x1x128xi32>
    %8 = arith.extui %7 : vector<1x1x128xi1> to vector<1x1x128xi32>
    %9 = arith.sitofp %8 : vector<1x1x128xi32> to vector<1x1x128xf32>
    %c33_i32 = arith.constant 33 : i32
    %10 = vector.broadcast %c33_i32 : i32 to vector<1x1x128xi32>
    %11 = arith.cmpi eq, %5, %10 : vector<1x1x128xi32>
    %12 = arith.extui %11 : vector<1x1x128xi1> to vector<1x1x128xi32>
    %13 = arith.sitofp %12 : vector<1x1x128xi32> to vector<1x1x128xf32>
    %14 = vector.broadcast %9 : vector<1x1x128xf32> to vector<32x8x128xf32>
    %15 = arith.mulf %4, %14 : vector<32x8x128xf32>
    %16 = vector.broadcast %13 : vector<1x1x128xf32> to vector<32x8x128xf32>
    %17 = arith.addf %15, %16 : vector<32x8x128xf32>
    %18 = vector.broadcast %13 : vector<1x1x128xf32> to vector<32x8x128xf32>
    %19 = arith.mulf %4, %18 : vector<32x8x128xf32>
    %20 = vector.broadcast %9 : vector<1x1x128xf32> to vector<32x8x128xf32>
    %21 = arith.addf %20, %19 : vector<32x8x128xf32>
    "tpu.trace_start"() <{level = 10 : i32, message = "bip,bjp->bij"}> : () -> ()
    %cst_4 = arith.constant dense<0.000000e+00> : vector<32x8x8xf32>
    %22 = tpu.matmul %17, %21, %cst_4 {dimension_numbers = #tpu.dot_dimension_numbers<[2], [2], [1], [1], [0, 0, 0, 1, 1, 1], [0], [0]>} : vector<32x8x128xf32>, vector<32x8x128xf32>, vector<32x8x8xf32> -> vector<32x8x8xf32>
    "tpu.trace_stop"() : () -> ()
    %cst_5 = arith.constant 2.000000e-01 : f32
    %23 = vector.broadcast %cst_5 : f32 to vector<32x8x8xf32>
    %24 = arith.mulf %23, %22 : vector<32x8x8xf32>
    %25 = arith.maximumf %22, %24 : vector<32x8x8xf32>
    %c0_6 = arith.constant 0 : index
    %c0_7 = arith.constant 0 : index
    %c0_8 = arith.constant 0 : index
    %26 = vector.load %arg2[%c0_6, %c0_7, %c0_8] : memref<32x8x8xf32, #tpu.memory_space<vmem>>, vector<32x8x8xf32>
    %cst_9 = arith.constant 0.000000e+00 : f32
    %27 = vector.broadcast %cst_9 : f32 to vector<32x8x8xf32>
    %28 = arith.cmpf ogt, %26, %27 : vector<32x8x8xf32>
    %cst_10 = arith.constant -9.000000e+15 : f32
    %29 = vector.broadcast %cst_10 : f32 to vector<32x8x8xf32>
    %30 = arith.select %28, %25, %29 : vector<32x8x8xi1>, vector<32x8x8xf32>
    %cst_11 = arith.constant dense<0xFF800000> : vector<32x8xf32>
    %31 = vector.multi_reduction <maximumf>, %30, %cst_11 [2] : vector<32x8x8xf32> to vector<32x8xf32>
    %32 = vector.shape_cast %31 : vector<32x8xf32> to vector<32x8x1xf32>
    %33 = vector.broadcast %32 : vector<32x8x1xf32> to vector<32x8x8xf32>
    %34 = arith.subf %30, %33 : vector<32x8x8xf32>
    %35 = math.exp %34 : vector<32x8x8xf32>
    %cst_12 = arith.constant dense<0.000000e+00> : vector<32x8xf32>
    %36 = vector.multi_reduction <add>, %35, %cst_12 [2] : vector<32x8x8xf32> to vector<32x8xf32>
    %37 = vector.shape_cast %36 : vector<32x8xf32> to vector<32x8x1xf32>
    %38 = tpu.reciprocal %37 {approx = true} : vector<32x8x1xf32> -> vector<32x8x1xf32>
    %39 = vector.broadcast %38 : vector<32x8x1xf32> to vector<32x8x8xf32>
    %40 = arith.mulf %35, %39 : vector<32x8x8xf32>
    "tpu.trace_start"() <{level = 10 : i32, message = "bij,bjp->bip"}> : () -> ()
    %cst_13 = arith.constant dense<0.000000e+00> : vector<32x8x128xf32>
    %41 = tpu.matmul %40, %4, %cst_13 {dimension_numbers = #tpu.dot_dimension_numbers<[2], [1], [1], [2], [0, 0, 0, 1, 1, 2], [0], [0]>} : vector<32x8x8xf32>, vector<32x8x128xf32>, vector<32x8x128xf32> -> vector<32x8x128xf32>
    "tpu.trace_stop"() : () -> ()
    %c0_14 = arith.constant 0 : index
    %c0_15 = arith.constant 0 : index
    %c0_16 = arith.constant 0 : index
    %42 = vector.load %arg4[%c0_14, %c0_15, %c0_16] : memref<32x8x128xf32, #tpu.memory_space<vmem>>, vector<32x8x128xf32>
    tpu.vector_store %arg4[%c0_14, %c0_15, %c0_16], %41 {strides = array<i32>} : memref<32x8x128xf32, #tpu.memory_space<vmem>>, vector<32x8x128xf32>,
    return
  }
  func.func @transform_0(%arg0: i32) -> (i32, i32, i32) {
    %c0_i32 = arith.constant 0 : i32
    %c0_i32_0 = arith.constant 0 : i32
    %c0_i32_1 = arith.constant 0 : i32
    return %arg0, %c0_i32, %c0_i32_0 : i32, i32, i32
  }
  func.func @transform_1(%arg0: i32) -> (i32, i32, i32) {
    %c0_i32 = arith.constant 0 : i32
    %c0_i32_0 = arith.constant 0 : i32
    %c0_i32_1 = arith.constant 0 : i32
    return %arg0, %c0_i32, %c0_i32_0 : i32, i32, i32
  }
  func.func @transform_2(%arg0: i32) -> (i32, i32) {
    %c0_i32 = arith.constant 0 : i32
    %c0_i32_0 = arith.constant 0 : i32
    %c0_i32_1 = arith.constant 0 : i32
    return %c0_i32, %c0_i32_0 : i32, i32
  }
  func.func @transform_3(%arg0: i32) -> (i32, i32, i32) {
    %c0_i32 = arith.constant 0 : i32
    %c0_i32_0 = arith.constant 0 : i32
    %c0_i32_1 = arith.constant 0 : i32
    return %arg0, %c0_i32, %c0_i32_0 : i32, i32, i32
  }
}

</mosaic_0001>

<llo_original>
// kernel: tpu_custom_call.1
$region0: #{tpu_custom_call.1}
  #allocation0 [shape = 'u32[]', space=smem, size = 0x4, offset = 0x4, fixed_abs, tag = 'smem constant byte address 0x4 - core index']
  #allocation1 [shape = 'u32[72,128]{1,0:T(1,128)}', space=vmem, size = 0x9000, scoped, tag = 'internal scratch']
  %s0 = inlined_call_operand.vmem [shape: bf16[32,8,32], index: 0, kind: input, shape index: {}]
  %s1 = inlined_call_operand.vmem [shape: f32[32,8,8], index: 1, kind: input, shape index: {}]
  %s2 = inlined_call_operand.vmem [shape: bf16[32,128], index: 2, kind: input, shape index: {}]
  %s3 = inlined_call_operand.hbm [shape: f32[32,8,128], index: 3, kind: output, shape index: {}]
  %s4 = sld [smem:[#allocation0]]
  $region22: #{tpu_custom_call.1} parent=0
    _
  %s6 = ssub.s32 1, %s4
  %s7 = scalar_select 0, %s6, %s4
  $region1: #{tpu_custom_call.1} parent=0
    #allocation2 [shape = 'u8[131072]{0}', space=vmem, size = 0x20000, scoped, tag = 'output window, operand 0, single buffered']
    #allocation3 [shape = 's32[1]{0}', space=sflag, size = 0x4, scoped, tag = 'scoped memory for tpu_custom_call.1']
    %8 = vsyncpa [#allocation3], 0
    // Predicated region
    $region2: #{tpu_custom_call.1} parent=1 // pred_check
      _
    $region3: #{tpu_custom_call.1} parent=1 // pred_check_branch
      %10 = sbr.rel (0) target = $region5
    $region4: #{tpu_custom_call.1} parent=1 // pred_region
      _
    $region5: #{tpu_custom_call.1} parent=1 // pred_fallthru
      _
    // Predicated region
    $region6: #{tpu_custom_call.1} parent=1 // pred_check
      _
    $region7: #{tpu_custom_call.1} parent=1 // pred_check_branch
      %12 = sbr.rel (0) target = $region9
    $region8: #{tpu_custom_call.1} parent=1 // pred_region
      _
    $region9: #{tpu_custom_call.1} parent=1 // pred_fallthru
      _
    // Predicated region
    $region10: #{tpu_custom_call.1} parent=1 // pred_check
      _
    $region11: #{tpu_custom_call.1} parent=1 // pred_check_branch
      %14 = sbr.rel (0) target = $region13
    $region12: #{tpu_custom_call.1} parent=1 // pred_region
      _
    $region13: #{tpu_custom_call.1} parent=1 // pred_fallthru
      _
    %v16 = vld [vmem:[%s0] sm:$0xf]
    %v17 = vld [vmem:[%s0 + $0x4] sm:$0xf]
    %v18 = vld [vmem:[%s0 + $0x8] sm:$0xf]
    %v19 = vld [vmem:[%s0 + $0xc] sm:$0xf]
    %v20 = vld [vmem:[%s0 + $0x10] sm:$0xf]
    %v21 = vld [vmem:[%s0 + $0x14] sm:$0xf]
    %v22 = vld [vmem:[%s0 + $0x18] sm:$0xf]
    %v23 = vld [vmem:[%s0 + $0x1c] sm:$0xf]
    %v24 = vld [vmem:[%s0 + $0x20] sm:$0xf]
    %v25 = vld [vmem:[%s0 + $0x24] sm:$0xf]
    %v26 = vld [vmem:[%s0 + $0x28] sm:$0xf]
    %v27 = vld [vmem:[%s0 + $0x2c] sm:$0xf]
    %v28 = vld [vmem:[%s0 + $0x30] sm:$0xf]
    %v29 = vld [vmem:[%s0 + $0x34] sm:$0xf]
    %v30 = vld [vmem:[%s0 + $0x38] sm:$0xf]
    %v31 = vld [vmem:[%s0 + $0x3c] sm:$0xf]
    %v32 = vld [vmem:[%s0 + $0x40] sm:$0xf]
    %v33 = vld [vmem:[%s0 + $0x44] sm:$0xf]
    %v34 = vld [vmem:[%s0 + $0x48] sm:$0xf]
    %v35 = vld [vmem:[%s0 + $0x4c] sm:$0xf]
    %v36 = vld [vmem:[%s0 + $0x50] sm:$0xf]
    %v37 = vld [vmem:[%s0 + $0x54] sm:$0xf]
    %v38 = vld [vmem:[%s0 + $0x58] sm:$0xf]
    %v39 = vld [vmem:[%s0 + $0x5c] sm:$0xf]
    %v40 = vld [vmem:[%s0 + $0x60] sm:$0xf]
    %v41 = vld [vmem:[%s0 + $0x64] sm:$0xf]
    %v42 = vld [vmem:[%s0 + $0x68] sm:$0xf]
    %v43 = vld [vmem:[%s0 + $0x6c] sm:$0xf]
    %v44 = vld [vmem:[%s0 + $0x70] sm:$0xf]
    %v45 = vld [vmem:[%s0 + $0x74] sm:$0xf]
    %v46 = vld [vmem:[%s0 + $0x78] sm:$0xf]
    %v47 = vld [vmem:[%s0 + $0x7c] sm:$0xf]
    %v48 = vld [vmem:[%s2] sm:$0xf]
    %v49 = vld [vmem:[%s2 + $0x4] sm:$0xf]
    %v50 = vld [vmem:[%s2 + $0x8] sm:$0xf]
    %v51 = vld [vmem:[%s2 + $0xc] sm:$0xf]
    %v84 = vunpack.c.l.b16 %v16
    %v85 = vunpack.c.l.b16 %v17
    %v86 = vunpack.c.l.b16 %v18
    %v87 = vunpack.c.l.b16 %v19
    %v88 = vunpack.c.l.b16 %v20
    %v89 = vunpack.c.l.b16 %v21
    %v90 = vunpack.c.l.b16 %v22
    %v91 = vunpack.c.l.b16 %v23
    %v92 = vunpack.c.l.b16 %v24
    %v93 = vunpack.c.l.b16 %v25
    %v94 = vunpack.c.l.b16 %v26
    %v95 = vunpack.c.l.b16 %v27
    %v96 = vunpack.c.l.b16 %v28
    %v97 = vunpack.c.l.b16 %v29
    %v98 = vunpack.c.l.b16 %v30
    %v99 = vunpack.c.l.b16 %v31
    %v100 = vunpack.c.l.b16 %v32
    %v101 = vunpack.c.l.b16 %v33
    %v102 = vunpack.c.l.b16 %v34
    %v103 = vunpack.c.l.b16 %v35
    %v104 = vunpack.c.l.b16 %v36
    %v105 = vunpack.c.l.b16 %v37
    %v106 = vunpack.c.l.b16 %v38
    %v107 = vunpack.c.l.b16 %v39
    %v108 = vunpack.c.l.b16 %v40
    %v109 = vunpack.c.l.b16 %v41
    %v110 = vunpack.c.l.b16 %v42
    %v111 = vunpack.c.l.b16 %v43
    %v112 = vunpack.c.l.b16 %v44
    %v113 = vunpack.c.l.b16 %v45
    %v114 = vunpack.c.l.b16 %v46
    %v115 = vunpack.c.l.b16 %v47
    %v116 = vpack.c.b16 %v85, %v84
    %v117 = vpack.c.b16 %v87, %v86
    %v118 = vpack.c.b16 %v89, %v88
    %v119 = vpack.c.b16 %v91, %v90
    %v120 = vpack.c.b16 %v93, %v92
    %v121 = vpack.c.b16 %v95, %v94
    %v122 = vpack.c.b16 %v97, %v96
    %v123 = vpack.c.b16 %v99, %v98
    %v124 = vpack.c.b16 %v101, %v100
    %v125 = vpack.c.b16 %v103, %v102
    %v126 = vpack.c.b16 %v105, %v104
    %v127 = vpack.c.b16 %v107, %v106
    %v128 = vpack.c.b16 %v109, %v108
    %v129 = vpack.c.b16 %v111, %v110
    %v130 = vpack.c.b16 %v113, %v112
    %v131 = vpack.c.b16 %v115, %v114
    %v136 = vunpack.c.l.b16 %v48
    %v137 = vunpack.c.l.b16 %v49
    %v138 = vunpack.c.l.b16 %v50
    %v139 = vunpack.c.l.b16 %v51
    %v140 = vpack.c.b16 %v137, %v136
    %v141 = vpack.c.b16 %v139, %v138
    %vm144 = vcmask 261120
    %v146 = vsel %vm144, %v116, 0
    %v149 = vsel %vm144, %v117, 0
    %v152 = vsel %vm144, %v118, 0
    %v155 = vsel %vm144, %v119, 0
    %v158 = vsel %vm144, %v120, 0
    %v161 = vsel %vm144, %v121, 0
    %v164 = vsel %vm144, %v122, 0
    %v167 = vsel %vm144, %v123, 0
    %v170 = vsel %vm144, %v124, 0
    %v173 = vsel %vm144, %v125, 0
    %v176 = vsel %vm144, %v126, 0
    %v179 = vsel %vm144, %v127, 0
    %v182 = vsel %vm144, %v128, 0
    %v185 = vsel %vm144, %v129, 0
    %v188 = vsel %vm144, %v130, 0
    %v191 = vsel %vm144, %v131, 0
    %193 = vmatpush.bf16.msra.mxu0 0
    %194 = vmatpush.bf16.msra.mxu0 0
    %195 = vmatpush.bf16.msra.mxu0 0
    %196 = vmatpush.bf16.msra.mxu0 0
    %197 = vmatpush.bf16.msra.mxu0 0
    %198 = vmatpush.bf16.msra.mxu0 0
    %199 = vmatpush.bf16.msra.mxu0 %v141
    %200 = vmatpush.bf16.msra.mxu0 %v140
    %201 = vmatmul.bf16.gmra.mxu0 %v146
    %v202 = vpop.f32.mrf.mxu0
    %v203 = vadd.f32 0.0, %v202
    %v204 = vpop.f32.mrf.mxu0
    %v205 = vadd.f32 0.0, %v204
    %206 = vmatmul.bf16.gmra.mxu0 %v149
    %v207 = vpop.f32.mrf.mxu0
    %v208 = vadd.f32 0.0, %v207
    %v209 = vpop.f32.mrf.mxu0
    %v210 = vadd.f32 0.0, %v209
    %211 = vmatmul.bf16.gmra.mxu0 %v152
    %v212 = vpop.f32.mrf.mxu0
    %v213 = vadd.f32 0.0, %v212
    %v214 = vpop.f32.mrf.mxu0
    %v215 = vadd.f32 0.0, %v214
    %216 = vmatmul.bf16.gmra.mxu0 %v155
    %v217 = vpop.f32.mrf.mxu0
    %v218 = vadd.f32 0.0, %v217
    %v219 = vpop.f32.mrf.mxu0
    %v220 = vadd.f32 0.0, %v219
    %221 = vmatmul.bf16.gmra.mxu0 %v158
    %v222 = vpop.f32.mrf.mxu0
    %v223 = vadd.f32 0.0, %v222
    %v224 = vpop.f32.mrf.mxu0
    %v225 = vadd.f32 0.0, %v224
    %226 = vmatmul.bf16.gmra.mxu0 %v161
    %v227 = vpop.f32.mrf.mxu0
    %v228 = vadd.f32 0.0, %v227
    %v229 = vpop.f32.mrf.mxu0
    %v230 = vadd.f32 0.0, %v229
    %231 = vmatmul.bf16.gmra.mxu0 %v164
    %v232 = vpop.f32.mrf.mxu0
    %v233 = vadd.f32 0.0, %v232
    %v234 = vpop.f32.mrf.mxu0
    %v235 = vadd.f32 0.0, %v234
    %236 = vmatmul.bf16.gmra.mxu0 %v167
    %v237 = vpop.f32.mrf.mxu0
    %v238 = vadd.f32 0.0, %v237
    %v239 = vpop.f32.mrf.mxu0
    %v240 = vadd.f32 0.0, %v239
    %241 = vmatmul.bf16.gmra.mxu0 %v170
    %v242 = vpop.f32.mrf.mxu0
    %v243 = vadd.f32 0.0, %v242
    %v244 = vpop.f32.mrf.mxu0
    %v245 = vadd.f32 0.0, %v244
    %246 = vmatmul.bf16.gmra.mxu0 %v173
    %v247 = vpop.f32.mrf.mxu0
    %v248 = vadd.f32 0.0, %v247
    %v249 = vpop.f32.mrf.mxu0
    %v250 = vadd.f32 0.0, %v249
    %251 = vmatmul.bf16.gmra.mxu0 %v176
    %v252 = vpop.f32.mrf.mxu0
    %v253 = vadd.f32 0.0, %v252
    %v254 = vpop.f32.mrf.mxu0
    %v255 = vadd.f32 0.0, %v254
    %256 = vmatmul.bf16.gmra.mxu0 %v179
    %v257 = vpop.f32.mrf.mxu0
    %v258 = vadd.f32 0.0, %v257
    %v259 = vpop.f32.mrf.mxu0
    %v260 = vadd.f32 0.0, %v259
    %261 = vmatmul.bf16.gmra.mxu0 %v182
    %v262 = vpop.f32.mrf.mxu0
    %v263 = vadd.f32 0.0, %v262
    %v264 = vpop.f32.mrf.mxu0
    %v265 = vadd.f32 0.0, %v264
    %266 = vmatmul.bf16.gmra.mxu0 %v185
    %v267 = vpop.f32.mrf.mxu0
    %v268 = vadd.f32 0.0, %v267
    %v269 = vpop.f32.mrf.mxu0
    %v270 = vadd.f32 0.0, %v269
    %271 = vmatmul.bf16.gmra.mxu0 %v188
    %v272 = vpop.f32.mrf.mxu0
    %v273 = vadd.f32 0.0, %v272
    %v274 = vpop.f32.mrf.mxu0
    %v275 = vadd.f32 0.0, %v274
    %276 = vmatmul.bf16.gmra.mxu0 %v191
    %v277 = vpop.f32.mrf.mxu0
    %v278 = vadd.f32 0.0, %v277
    %v279 = vpop.f32.mrf.mxu0
    %v280 = vadd.f32 0.0, %v279
    %281 = vdwg.mxu0
    %v282 = vlaneseq
    %v283 = vand.u32 %v282, 127
    %vm284 = vcmp.eq.s32.totalorder %v283, 32
    %v285 = vsel %vm284, 1, 0
    %v286 = vcvt.s32.f32 %v285
    %vm287 = vcmp.eq.s32.totalorder %v283, 33
    %v288 = vsel %vm287, 1, 0
    %v289 = vcvt.s32.f32 %v288
    %v290 = vmul.f32 %v203, %v286
    %v291 = vmul.f32 %v205, %v286
    %v292 = vmul.f32 %v208, %v286
    %v293 = vmul.f32 %v210, %v286
    %v294 = vmul.f32 %v213, %v286
    %v295 = vmul.f32 %v215, %v286
    %v296 = vmul.f32 %v218, %v286
    %v297 = vmul.f32 %v220, %v286
    %v298 = vmul.f32 %v223, %v286
    %v299 = vmul.f32 %v225, %v286
    %v300 = vmul.f32 %v228, %v286
    %v301 = vmul.f32 %v230, %v286
    %v302 = vmul.f32 %v233, %v286
    %v303 = vmul.f32 %v235, %v286
    %v304 = vmul.f32 %v238, %v286
    %v305 = vmul.f32 %v240, %v286
    %v306 = vmul.f32 %v243, %v286
    %v307 = vmul.f32 %v245, %v286
    %v308 = vmul.f32 %v248, %v286
    %v309 = vmul.f32 %v250, %v286
    %v310 = vmul.f32 %v253, %v286
    %v311 = vmul.f32 %v255, %v286
    %v312 = vmul.f32 %v258, %v286
    %v313 = vmul.f32 %v260, %v286
    %v314 = vmul.f32 %v263, %v286
    %v315 = vmul.f32 %v265, %v286
    %v316 = vmul.f32 %v268, %v286
    %v317 = vmul.f32 %v270, %v286
    %v318 = vmul.f32 %v273, %v286
    %v319 = vmul.f32 %v275, %v286
    %v320 = vmul.f32 %v278, %v286
    %v321 = vmul.f32 %v280, %v286
    %v322 = vadd.f32 %v290, %v289
    %v323 = vadd.f32 %v291, %v289
    %v324 = vadd.f32 %v292, %v289
    %v325 = vadd.f32 %v293, %v289
    %v326 = vadd.f32 %v294, %v289
    %v327 = vadd.f32 %v295, %v289
    %v328 = vadd.f32 %v296, %v289
    %v329 = vadd.f32 %v297, %v289
    %v330 = vadd.f32 %v298, %v289
    %v331 = vadd.f32 %v299, %v289
    %v332 = vadd.f32 %v300, %v289
    %v333 = vadd.f32 %v301, %v289
    %v334 = vadd.f32 %v302, %v289
    %v335 = vadd.f32 %v303, %v289
    %v336 = vadd.f32 %v304, %v289
    %v337 = vadd.f32 %v305, %v289
    %v338 = vadd.f32 %v306, %v289
    %v339 = vadd.f32 %v307, %v289
    %v340 = vadd.f32 %v308, %v289
    %v341 = vadd.f32 %v309, %v289
    %v342 = vadd.f32 %v310, %v289
    %v343 = vadd.f32 %v311, %v289
    %v344 = vadd.f32 %v312, %v289
    %v345 = vadd.f32 %v313, %v289
    %v346 = vadd.f32 %v314, %v289
    %v347 = vadd.f32 %v315, %v289
    %v348 = vadd.f32 %v316, %v289
    %v349 = vadd.f32 %v317, %v289
    %v350 = vadd.f32 %v318, %v289
    %v351 = vadd.f32 %v319, %v289
    %v352 = vadd.f32 %v320, %v289
    %v353 = vadd.f32 %v321, %v289
    %v354 = vmul.f32 %v203, %v289
    %v355 = vmul.f32 %v205, %v289
    %v356 = vmul.f32 %v208, %v289
    %v357 = vmul.f32 %v210, %v289
    %v358 = vmul.f32 %v213, %v289
    %v359 = vmul.f32 %v215, %v289
    %v360 = vmul.f32 %v218, %v289
    %v361 = vmul.f32 %v220, %v289
    %v362 = vmul.f32 %v223, %v289
    %v363 = vmul.f32 %v225, %v289
    %v364 = vmul.f32 %v228, %v289
    %v365 = vmul.f32 %v230, %v289
    %v366 = vmul.f32 %v233, %v289
    %v367 = vmul.f32 %v235, %v289
    %v368 = vmul.f32 %v238, %v289
    %v369 = vmul.f32 %v240, %v289
    %v370 = vmul.f32 %v243, %v289
    %v371 = vmul.f32 %v245, %v289
    %v372 = vmul.f32 %v248, %v289
    %v373 = vmul.f32 %v250, %v289
    %v374 = vmul.f32 %v253, %v289
    %v375 = vmul.f32 %v255, %v289
    %v376 = vmul.f32 %v258, %v289
    %v377 = vmul.f32 %v260, %v289
    %v378 = vmul.f32 %v263, %v289
    %v379 = vmul.f32 %v265, %v289
    %v380 = vmul.f32 %v268, %v289
    %v381 = vmul.f32 %v270, %v289
    %v382 = vmul.f32 %v273, %v289
    %v383 = vmul.f32 %v275, %v289
    %v384 = vmul.f32 %v278, %v289
    %v385 = vmul.f32 %v280, %v289
    %v386 = vadd.f32 %v286, %v354
    %v387 = vadd.f32 %v286, %v355
    %v388 = vadd.f32 %v286, %v356
    %v389 = vadd.f32 %v286, %v357
    %v390 = vadd.f32 %v286, %v358
    %v391 = vadd.f32 %v286, %v359
    %v392 = vadd.f32 %v286, %v360
    %v393 = vadd.f32 %v286, %v361
    %v394 = vadd.f32 %v286, %v362
    %v395 = vadd.f32 %v286, %v363
    %v396 = vadd.f32 %v286, %v364
    %v397 = vadd.f32 %v286, %v365
    %v398 = vadd.f32 %v286, %v366
    %v399 = vadd.f32 %v286, %v367
    %v400 = vadd.f32 %v286, %v368
    %v401 = vadd.f32 %v286, %v369
    %v402 = vadd.f32 %v286, %v370
    %v403 = vadd.f32 %v286, %v371
    %v404 = vadd.f32 %v286, %v372
    %v405 = vadd.f32 %v286, %v373
    %v406 = vadd.f32 %v286, %v374
    %v407 = vadd.f32 %v286, %v375
    %v408 = vadd.f32 %v286, %v376
    %v409 = vadd.f32 %v286, %v377
    %v410 = vadd.f32 %v286, %v378
    %v411 = vadd.f32 %v286, %v379
    %v412 = vadd.f32 %v286, %v380
    %v413 = vadd.f32 %v286, %v381
    %v414 = vadd.f32 %v286, %v382
    %v415 = vadd.f32 %v286, %v383
    %v416 = vadd.f32 %v286, %v384
    %v417 = vadd.f32 %v286, %v385
    %418 = vmatpush.xpose.msra.mxu0 0.0
    %419 = vmatpush.xpose.msra.mxu0 0.0
    %420 = vmatpush.xpose.msra.mxu0 0.0
    %421 = vmatpush.xpose.msra.mxu0 0.0
    %422 = vmatpush.xpose.msra.mxu0 0.0
    %423 = vmatpush.xpose.msra.mxu0 0.0
    %424 = vmatpush.xpose.msra.mxu0 0.0
    %425 = vmatpush.xpose.msra.mxu0 0.0
    %426 = vmatpush.xpose.msra.mxu0 0.0
    %427 = vmatpush.xpose.msra.mxu0 0.0
    %428 = vmatpush.xpose.msra.mxu0 0.0
    %429 = vmatpush.xpose.msra.mxu0 0.0
    %430 = vmatpush.xpose.msra.mxu0 0.0
    %431 = vmatpush.xpose.msra.mxu0 0.0
    %432 = vmatpush.xpose.msra.mxu0 0.0
    %433 = vmatpush.xpose.msra.mxu0 %v386
    %434 = vmatmul.f32.gmra.mxu0 %v322
    %v435 = vpop.f32.mrf.mxu0
    %v436 = vadd.f32 0.0, %v435
    %437 = vdwg.mxu0
    %438 = vmatpush.xpose.msra.mxu0 0.0
    %439 = vmatpush.xpose.msra.mxu0 0.0
    %440 = vmatpush.xpose.msra.mxu0 0.0
    %441 = vmatpush.xpose.msra.mxu0 0.0
    %442 = vmatpush.xpose.msra.mxu0 0.0
    %443 = vmatpush.xpose.msra.mxu0 0.0
    %444 = vmatpush.xpose.msra.mxu0 0.0
    %445 = vmatpush.xpose.msra.mxu0 0.0
    %446 = vmatpush.xpose.msra.mxu0 0.0
    %447 = vmatpush.xpose.msra.mxu0 0.0
    %448 = vmatpush.xpose.msra.mxu0 0.0
    %449 = vmatpush.xpose.msra.mxu0 0.0
    %450 = vmatpush.xpose.msra.mxu0 0.0
    %451 = vmatpush.xpose.msra.mxu0 0.0
    %452 = vmatpush.xpose.msra.mxu0 0.0
    %453 = vmatpush.xpose.msra.mxu0 %v387
    %454 = vmatmul.f32.gmra.mxu0 %v323
    %v455 = vpop.f32.mrf.mxu0
    %v456 = vadd.f32 0.0, %v455
    %457 = vdwg.mxu0
    %458 = vmatpush.xpose.msra.mxu0 0.0
    %459 = vmatpush.xpose.msra.mxu0 0.0
    %460 = vmatpush.xpose.msra.mxu0 0.0
    %461 = vmatpush.xpose.msra.mxu0 0.0
    %462 = vmatpush.xpose.msra.mxu0 0.0
    %463 = vmatpush.xpose.msra.mxu0 0.0
    %464 = vmatpush.xpose.msra.mxu0 0.0
    %465 = vmatpush.xpose.msra.mxu0 0.0
    %466 = vmatpush.xpose.msra.mxu0 0.0
    %467 = vmatpush.xpose.msra.mxu0 0.0
    %468 = vmatpush.xpose.msra.mxu0 0.0
    %469 = vmatpush.xpose.msra.mxu0 0.0
    %470 = vmatpush.xpose.msra.mxu0 0.0
    %471 = vmatpush.xpose.msra.mxu0 0.0
    %472 = vmatpush.xpose.msra.mxu0 0.0
    %473 = vmatpush.xpose.msra.mxu0 %v388
    %474 = vmatmul.f32.gmra.mxu0 %v324
    %v475 = vpop.f32.mrf.mxu0
    %v476 = vadd.f32 0.0, %v475
    %477 = vdwg.mxu0
    %478 = vmatpush.xpose.msra.mxu0 0.0
    %479 = vmatpush.xpose.msra.mxu0 0.0
    %480 = vmatpush.xpose.msra.mxu0 0.0
    %481 = vmatpush.xpose.msra.mxu0 0.0
    %482 = vmatpush.xpose.msra.mxu0 0.0
    %483 = vmatpush.xpose.msra.mxu0 0.0
    %484 = vmatpush.xpose.msra.mxu0 0.0
    %485 = vmatpush.xpose.msra.mxu0 0.0
    %486 = vmatpush.xpose.msra.mxu0 0.0
    %487 = vmatpush.xpose.msra.mxu0 0.0
    %488 = vmatpush.xpose.msra.mxu0 0.0
    %489 = vmatpush.xpose.msra.mxu0 0.0
    %490 = vmatpush.xpose.msra.mxu0 0.0
    %491 = vmatpush.xpose.msra.mxu0 0.0
    %492 = vmatpush.xpose.msra.mxu0 0.0
    %493 = vmatpush.xpose.msra.mxu0 %v389
    %494 = vmatmul.f32.gmra.mxu0 %v325
    %v495 = vpop.f32.mrf.mxu0
    %v496 = vadd.f32 0.0, %v495
    %497 = vdwg.mxu0
    %498 = vmatpush.xpose.msra.mxu0 0.0
    %499 = vmatpush.xpose.msra.mxu0 0.0
    %500 = vmatpush.xpose.msra.mxu0 0.0
    %501 = vmatpush.xpose.msra.mxu0 0.0
    %502 = vmatpush.xpose.msra.mxu0 0.0
    %503 = vmatpush.xpose.msra.mxu0 0.0
    %504 = vmatpush.xpose.msra.mxu0 0.0
    %505 = vmatpush.xpose.msra.mxu0 0.0
    %506 = vmatpush.xpose.msra.mxu0 0.0
    %507 = vmatpush.xpose.msra.mxu0 0.0
    %508 = vmatpush.xpose.msra.mxu0 0.0
    %509 = vmatpush.xpose.msra.mxu0 0.0
    %510 = vmatpush.xpose.msra.mxu0 0.0
    %511 = vmatpush.xpose.msra.mxu0 0.0
    %512 = vmatpush.xpose.msra.mxu0 0.0
    %513 = vmatpush.xpose.msra.mxu0 %v390
    %514 = vmatmul.f32.gmra.mxu0 %v326
    %v515 = vpop.f32.mrf.mxu0
    %v516 = vadd.f32 0.0, %v515
    %517 = vdwg.mxu0
    %518 = vmatpush.xpose.msra.mxu0 0.0
    %519 = vmatpush.xpose.msra.mxu0 0.0
    %520 = vmatpush.xpose.msra.mxu0 0.0
    %521 = vmatpush.xpose.msra.mxu0 0.0
    %522 = vmatpush.xpose.msra.mxu0 0.0
    %523 = vmatpush.xpose.msra.mxu0 0.0
    %524 = vmatpush.xpose.msra.mxu0 0.0
    %525 = vmatpush.xpose.msra.mxu0 0.0
    %526 = vmatpush.xpose.msra.mxu0 0.0
    %527 = vmatpush.xpose.msra.mxu0 0.0
    %528 = vmatpush.xpose.msra.mxu0 0.0
    %529 = vmatpush.xpose.msra.mxu0 0.0
    %530 = vmatpush.xpose.msra.mxu0 0.0
    %531 = vmatpush.xpose.msra.mxu0 0.0
    %532 = vmatpush.xpose.msra.mxu0 0.0
    %533 = vmatpush.xpose.msra.mxu0 %v391
    %534 = vmatmul.f32.gmra.mxu0 %v327
    %v535 = vpop.f32.mrf.mxu0
    %v536 = vadd.f32 0.0, %v535
    %537 = vdwg.mxu0
    %538 = vmatpush.xpose.msra.mxu0 0.0
    %539 = vmatpush.xpose.msra.mxu0 0.0
    %540 = vmatpush.xpose.msra.mxu0 0.0
    %541 = vmatpush.xpose.msra.mxu0 0.0
    %542 = vmatpush.xpose.msra.mxu0 0.0
    %543 = vmatpush.xpose.msra.mxu0 0.0
    %544 = vmatpush.xpose.msra.mxu0 0.0
    %545 = vmatpush.xpose.msra.mxu0 0.0
    %546 = vmatpush.xpose.msra.mxu0 0.0
    %547 = vmatpush.xpose.msra.mxu0 0.0
    %548 = vmatpush.xpose.msra.mxu0 0.0
    %549 = vmatpush.xpose.msra.mxu0 0.0
    %550 = vmatpush.xpose.msra.mxu0 0.0
    %551 = vmatpush.xpose.msra.mxu0 0.0
    %552 = vmatpush.xpose.msra.mxu0 0.0
    %553 = vmatpush.xpose.msra.mxu0 %v392
    %554 = vmatmul.f32.gmra.mxu0 %v328
    %v555 = vpop.f32.mrf.mxu0
    %v556 = vadd.f32 0.0, %v555
    %557 = vdwg.mxu0
    %558 = vmatpush.xpose.msra.mxu0 0.0
    %559 = vmatpush.xpose.msra.mxu0 0.0
    %560 = vmatpush.xpose.msra.mxu0 0.0
    %561 = vmatpush.xpose.msra.mxu0 0.0
    %562 = vmatpush.xpose.msra.mxu0 0.0
    %563 = vmatpush.xpose.msra.mxu0 0.0
    %564 = vmatpush.xpose.msra.mxu0 0.0
    %565 = vmatpush.xpose.msra.mxu0 0.0
    %566 = vmatpush.xpose.msra.mxu0 0.0
    %567 = vmatpush.xpose.msra.mxu0 0.0
    %568 = vmatpush.xpose.msra.mxu0 0.0
    %569 = vmatpush.xpose.msra.mxu0 0.0
    %570 = vmatpush.xpose.msra.mxu0 0.0
    %571 = vmatpush.xpose.msra.mxu0 0.0
    %572 = vmatpush.xpose.msra.mxu0 0.0
    %573 = vmatpush.xpose.msra.mxu0 %v393
    %574 = vmatmul.f32.gmra.mxu0 %v329
    %v575 = vpop.f32.mrf.mxu0
    %v576 = vadd.f32 0.0, %v575
    %577 = vdwg.mxu0
    %578 = vmatpush.xpose.msra.mxu0 0.0
    %579 = vmatpush.xpose.msra.mxu0 0.0
    %580 = vmatpush.xpose.msra.mxu0 0.0
    %581 = vmatpush.xpose.msra.mxu0 0.0
    %582 = vmatpush.xpose.msra.mxu0 0.0
    %583 = vmatpush.xpose.msra.mxu0 0.0
    %584 = vmatpush.xpose.msra.mxu0 0.0
    %585 = vmatpush.xpose.msra.mxu0 0.0
    %586 = vmatpush.xpose.msra.mxu0 0.0
    %587 = vmatpush.xpose.msra.mxu0 0.0
    %588 = vmatpush.xpose.msra.mxu0 0.0
    %589 = vmatpush.xpose.msra.mxu0 0.0
    %590 = vmatpush.xpose.msra.mxu0 0.0
    %591 = vmatpush.xpose.msra.mxu0 0.0
    %592 = vmatpush.xpose.msra.mxu0 0.0
    %593 = vmatpush.xpose.msra.mxu0 %v394
    %594 = vmatmul.f32.gmra.mxu0 %v330
    %v595 = vpop.f32.mrf.mxu0
    %v596 = vadd.f32 0.0, %v595
    %597 = vdwg.mxu0
    %598 = vmatpush.xpose.msra.mxu0 0.0
    %599 = vmatpush.xpose.msra.mxu0 0.0
    %600 = vmatpush.xpose.msra.mxu0 0.0
    %601 = vmatpush.xpose.msra.mxu0 0.0
    %602 = vmatpush.xpose.msra.mxu0 0.0
    %603 = vmatpush.xpose.msra.mxu0 0.0
    %604 = vmatpush.xpose.msra.mxu0 0.0
    %605 = vmatpush.xpose.msra.mxu0 0.0
    %606 = vmatpush.xpose.msra.mxu0 0.0
    %607 = vmatpush.xpose.msra.mxu0 0.0
    %608 = vmatpush.xpose.msra.mxu0 0.0
    %609 = vmatpush.xpose.msra.mxu0 0.0
    %610 = vmatpush.xpose.msra.mxu0 0.0
    %611 = vmatpush.xpose.msra.mxu0 0.0
    %612 = vmatpush.xpose.msra.mxu0 0.0
    %613 = vmatpush.xpose.msra.mxu0 %v395
    %614 = vmatmul.f32.gmra.mxu0 %v331
    %v615 = vpop.f32.mrf.mxu0
    %v616 = vadd.f32 0.0, %v615
    %617 = vdwg.mxu0
    %618 = vmatpush.xpose.msra.mxu0 0.0
    %619 = vmatpush.xpose.msra.mxu0 0.0
    %620 = vmatpush.xpose.msra.mxu0 0.0
    %621 = vmatpush.xpose.msra.mxu0 0.0
    %622 = vmatpush.xpose.msra.mxu0 0.0
    %623 = vmatpush.xpose.msra.mxu0 0.0
    %624 = vmatpush.xpose.msra.mxu0 0.0
    %625 = vmatpush.xpose.msra.mxu0 0.0
    %626 = vmatpush.xpose.msra.mxu0 0.0
    %627 = vmatpush.xpose.msra.mxu0 0.0
    %628 = vmatpush.xpose.msra.mxu0 0.0
    %629 = vmatpush.xpose.msra.mxu0 0.0
    %630 = vmatpush.xpose.msra.mxu0 0.0
    %631 = vmatpush.xpose.msra.mxu0 0.0
    %632 = vmatpush.xpose.msra.mxu0 0.0
    %633 = vmatpush.xpose.msra.mxu0 %v396
    %634 = vmatmul.f32.gmra.mxu0 %v332
    %v635 = vpop.f32.mrf.mxu0
    %v636 = vadd.f32 0.0, %v635
    %637 = vdwg.mxu0
    %638 = vmatpush.xpose.msra.mxu0 0.0
    %639 = vmatpush.xpose.msra.mxu0 0.0
    %640 = vmatpush.xpose.msra.mxu0 0.0
    %641 = vmatpush.xpose.msra.mxu0 0.0
    %642 = vmatpush.xpose.msra.mxu0 0.0
    %643 = vmatpush.xpose.msra.mxu0 0.0
    %644 = vmatpush.xpose.msra.mxu0 0.0
    %645 = vmatpush.xpose.msra.mxu0 0.0
    %646 = vmatpush.xpose.msra.mxu0 0.0
    %647 = vmatpush.xpose.msra.mxu0 0.0
    %648 = vmatpush.xpose.msra.mxu0 0.0
    %649 = vmatpush.xpose.msra.mxu0 0.0
    %650 = vmatpush.xpose.msra.mxu0 0.0
    %651 = vmatpush.xpose.msra.mxu0 0.0
    %652 = vmatpush.xpose.msra.mxu0 0.0
    %653 = vmatpush.xpose.msra.mxu0 %v397
    %654 = vmatmul.f32.gmra.mxu0 %v333
    %v655 = vpop.f32.mrf.mxu0
    %v656 = vadd.f32 0.0, %v655
    %657 = vdwg.mxu0
    %658 = vmatpush.xpose.msra.mxu0 0.0
    %659 = vmatpush.xpose.msra.mxu0 0.0
    %660 = vmatpush.xpose.msra.mxu0 0.0
    %661 = vmatpush.xpose.msra.mxu0 0.0
    %662 = vmatpush.xpose.msra.mxu0 0.0
    %663 = vmatpush.xpose.msra.mxu0 0.0
    %664 = vmatpush.xpose.msra.mxu0 0.0
    %665 = vmatpush.xpose.msra.mxu0 0.0
    %666 = vmatpush.xpose.msra.mxu0 0.0
    %667 = vmatpush.xpose.msra.mxu0 0.0
    %668 = vmatpush.xpose.msra.mxu0 0.0
    %669 = vmatpush.xpose.msra.mxu0 0.0
    %670 = vmatpush.xpose.msra.mxu0 0.0
    %671 = vmatpush.xpose.msra.mxu0 0.0
    %672 = vmatpush.xpose.msra.mxu0 0.0
    %673 = vmatpush.xpose.msra.mxu0 %v398
    %674 = vmatmul.f32.gmra.mxu0 %v334
    %v675 = vpop.f32.mrf.mxu0
    %v676 = vadd.f32 0.0, %v675
    %677 = vdwg.mxu0
    %678 = vmatpush.xpose.msra.mxu0 0.0
    %679 = vmatpush.xpose.msra.mxu0 0.0
    %680 = vmatpush.xpose.msra.mxu0 0.0
    %681 = vmatpush.xpose.msra.mxu0 0.0
    %682 = vmatpush.xpose.msra.mxu0 0.0
    %683 = vmatpush.xpose.msra.mxu0 0.0
    %684 = vmatpush.xpose.msra.mxu0 0.0
    %685 = vmatpush.xpose.msra.mxu0 0.0
    %686 = vmatpush.xpose.msra.mxu0 0.0
    %687 = vmatpush.xpose.msra.mxu0 0.0
    %688 = vmatpush.xpose.msra.mxu0 0.0
    %689 = vmatpush.xpose.msra.mxu0 0.0
    %690 = vmatpush.xpose.msra.mxu0 0.0
    %691 = vmatpush.xpose.msra.mxu0 0.0
    %692 = vmatpush.xpose.msra.mxu0 0.0
    %693 = vmatpush.xpose.msra.mxu0 %v399
    %694 = vmatmul.f32.gmra.mxu0 %v335
    %v695 = vpop.f32.mrf.mxu0
    %v696 = vadd.f32 0.0, %v695
    %697 = vdwg.mxu0
    %698 = vmatpush.xpose.msra.mxu0 0.0
    %699 = vmatpush.xpose.msra.mxu0 0.0
    %700 = vmatpush.xpose.msra.mxu0 0.0
    %701 = vmatpush.xpose.msra.mxu0 0.0
    %702 = vmatpush.xpose.msra.mxu0 0.0
    %703 = vmatpush.xpose.msra.mxu0 0.0
    %704 = vmatpush.xpose.msra.mxu0 0.0
    %705 = vmatpush.xpose.msra.mxu0 0.0
    %706 = vmatpush.xpose.msra.mxu0 0.0
    %707 = vmatpush.xpose.msra.mxu0 0.0
    %708 = vmatpush.xpose.msra.mxu0 0.0
    %709 = vmatpush.xpose.msra.mxu0 0.0
    %710 = vmatpush.xpose.msra.mxu0 0.0
    %711 = vmatpush.xpose.msra.mxu0 0.0
    %712 = vmatpush.xpose.msra.mxu0 0.0
    %713 = vmatpush.xpose.msra.mxu0 %v400
    %714 = vmatmul.f32.gmra.mxu0 %v336
    %v715 = vpop.f32.mrf.mxu0
    %v716 = vadd.f32 0.0, %v715
    %717 = vdwg.mxu0
    %718 = vmatpush.xpose.msra.mxu0 0.0
    %719 = vmatpush.xpose.msra.mxu0 0.0
    %720 = vmatpush.xpose.msra.mxu0 0.0
    %721 = vmatpush.xpose.msra.mxu0 0.0
    %722 = vmatpush.xpose.msra.mxu0 0.0
    %723 = vmatpush.xpose.msra.mxu0 0.0
    %724 = vmatpush.xpose.msra.mxu0 0.0
    %725 = vmatpush.xpose.msra.mxu0 0.0
    %726 = vmatpush.xpose.msra.mxu0 0.0
    %727 = vmatpush.xpose.msra.mxu0 0.0
    %728 = vmatpush.xpose.msra.mxu0 0.0
    %729 = vmatpush.xpose.msra.mxu0 0.0
    %730 = vmatpush.xpose.msra.mxu0 0.0
    %731 = vmatpush.xpose.msra.mxu0 0.0
    %732 = vmatpush.xpose.msra.mxu0 0.0
    %733 = vmatpush.xpose.msra.mxu0 %v401
    %734 = vmatmul.f32.gmra.mxu0 %v337
    %v735 = vpop.f32.mrf.mxu0
    %v736 = vadd.f32 0.0, %v735
    %737 = vdwg.mxu0
    %738 = vmatpush.xpose.msra.mxu0 0.0
    %739 = vmatpush.xpose.msra.mxu0 0.0
    %740 = vmatpush.xpose.msra.mxu0 0.0
    %741 = vmatpush.xpose.msra.mxu0 0.0
    %742 = vmatpush.xpose.msra.mxu0 0.0
    %743 = vmatpush.xpose.msra.mxu0 0.0
    %744 = vmatpush.xpose.msra.mxu0 0.0
    %745 = vmatpush.xpose.msra.mxu0 0.0
    %746 = vmatpush.xpose.msra.mxu0 0.0
    %747 = vmatpush.xpose.msra.mxu0 0.0
    %748 = vmatpush.xpose.msra.mxu0 0.0
    %749 = vmatpush.xpose.msra.mxu0 0.0
    %750 = vmatpush.xpose.msra.mxu0 0.0
    %751 = vmatpush.xpose.msra.mxu0 0.0
    %752 = vmatpush.xpose.msra.mxu0 0.0
    %753 = vmatpush.xpose.msra.mxu0 %v402
    %754 = vmatmul.f32.gmra.mxu0 %v338
    %v755 = vpop.f32.mrf.mxu0
    %v756 = vadd.f32 0.0, %v755
    %757 = vdwg.mxu0
    %758 = vmatpush.xpose.msra.mxu0 0.0
    %759 = vmatpush.xpose.msra.mxu0 0.0
    %760 = vmatpush.xpose.msra.mxu0 0.0
    %761 = vmatpush.xpose.msra.mxu0 0.0
    %762 = vmatpush.xpose.msra.mxu0 0.0
    %763 = vmatpush.xpose.msra.mxu0 0.0
    %764 = vmatpush.xpose.msra.mxu0 0.0
    %765 = vmatpush.xpose.msra.mxu0 0.0
    %766 = vmatpush.xpose.msra.mxu0 0.0
    %767 = vmatpush.xpose.msra.mxu0 0.0
    %768 = vmatpush.xpose.msra.mxu0 0.0
    %769 = vmatpush.xpose.msra.mxu0 0.0
    %770 = vmatpush.xpose.msra.mxu0 0.0
    %771 = vmatpush.xpose.msra.mxu0 0.0
    %772 = vmatpush.xpose.msra.mxu0 0.0
    %773 = vmatpush.xpose.msra.mxu0 %v403
    %774 = vmatmul.f32.gmra.mxu0 %v339
    %v775 = vpop.f32.mrf.mxu0
    %v776 = vadd.f32 0.0, %v775
    %777 = vdwg.mxu0
    %778 = vmatpush.xpose.msra.mxu0 0.0
    %779 = vmatpush.xpose.msra.mxu0 0.0
    %780 = vmatpush.xpose.msra.mxu0 0.0
    %781 = vmatpush.xpose.msra.mxu0 0.0
    %782 = vmatpush.xpose.msra.mxu0 0.0
    %783 = vmatpush.xpose.msra.mxu0 0.0
    %784 = vmatpush.xpose.msra.mxu0 0.0
    %785 = vmatpush.xpose.msra.mxu0 0.0
    %786 = vmatpush.xpose.msra.mxu0 0.0
    %787 = vmatpush.xpose.msra.mxu0 0.0
    %788 = vmatpush.xpose.msra.mxu0 0.0
    %789 = vmatpush.xpose.msra.mxu0 0.0
    %790 = vmatpush.xpose.msra.mxu0 0.0
    %791 = vmatpush.xpose.msra.mxu0 0.0
    %792 = vmatpush.xpose.msra.mxu0 0.0
    %793 = vmatpush.xpose.msra.mxu0 %v404
    %794 = vmatmul.f32.gmra.mxu0 %v340
    %v795 = vpop.f32.mrf.mxu0
    %v796 = vadd.f32 0.0, %v795
    %797 = vdwg.mxu0
    %798 = vmatpush.xpose.msra.mxu0 0.0
    %799 = vmatpush.xpose.msra.mxu0 0.0
    %800 = vmatpush.xpose.msra.mxu0 0.0
    %801 = vmatpush.xpose.msra.mxu0 0.0
    %802 = vmatpush.xpose.msra.mxu0 0.0
    %803 = vmatpush.xpose.msra.mxu0 0.0
    %804 = vmatpush.xpose.msra.mxu0 0.0
    %805 = vmatpush.xpose.msra.mxu0 0.0
    %806 = vmatpush.xpose.msra.mxu0 0.0
    %807 = vmatpush.xpose.msra.mxu0 0.0
    %808 = vmatpush.xpose.msra.mxu0 0.0
    %809 = vmatpush.xpose.msra.mxu0 0.0
    %810 = vmatpush.xpose.msra.mxu0 0.0
    %811 = vmatpush.xpose.msra.mxu0 0.0
    %812 = vmatpush.xpose.msra.mxu0 0.0
    %813 = vmatpush.xpose.msra.mxu0 %v405
    %814 = vmatmul.f32.gmra.mxu0 %v341
    %v815 = vpop.f32.mrf.mxu0
    %v816 = vadd.f32 0.0, %v815
    %817 = vdwg.mxu0
    %818 = vmatpush.xpose.msra.mxu0 0.0
    %819 = vmatpush.xpose.msra.mxu0 0.0
    %820 = vmatpush.xpose.msra.mxu0 0.0
    %821 = vmatpush.xpose.msra.mxu0 0.0
    %822 = vmatpush.xpose.msra.mxu0 0.0
    %823 = vmatpush.xpose.msra.mxu0 0.0
    %824 = vmatpush.xpose.msra.mxu0 0.0
    %825 = vmatpush.xpose.msra.mxu0 0.0
    %826 = vmatpush.xpose.msra.mxu0 0.0
    %827 = vmatpush.xpose.msra.mxu0 0.0
    %828 = vmatpush.xpose.msra.mxu0 0.0
    %829 = vmatpush.xpose.msra.mxu0 0.0
    %830 = vmatpush.xpose.msra.mxu0 0.0
    %831 = vmatpush.xpose.msra.mxu0 0.0
    %832 = vmatpush.xpose.msra.mxu0 0.0
    %833 = vmatpush.xpose.msra.mxu0 %v406
    %834 = vmatmul.f32.gmra.mxu0 %v342
    %v835 = vpop.f32.mrf.mxu0
    %v836 = vadd.f32 0.0, %v835
    %837 = vdwg.mxu0
    %838 = vmatpush.xpose.msra.mxu0 0.0
    %839 = vmatpush.xpose.msra.mxu0 0.0
    %840 = vmatpush.xpose.msra.mxu0 0.0
    %841 = vmatpush.xpose.msra.mxu0 0.0
    %842 = vmatpush.xpose.msra.mxu0 0.0
    %843 = vmatpush.xpose.msra.mxu0 0.0
    %844 = vmatpush.xpose.msra.mxu0 0.0
    %845 = vmatpush.xpose.msra.mxu0 0.0
    %846 = vmatpush.xpose.msra.mxu0 0.0
    %847 = vmatpush.xpose.msra.mxu0 0.0
    %848 = vmatpush.xpose.msra.mxu0 0.0
    %849 = vmatpush.xpose.msra.mxu0 0.0
    %850 = vmatpush.xpose.msra.mxu0 0.0
    %851 = vmatpush.xpose.msra.mxu0 0.0
    %852 = vmatpush.xpose.msra.mxu0 0.0
    %853 = vmatpush.xpose.msra.mxu0 %v407
    %854 = vmatmul.f32.gmra.mxu0 %v343
    %v855 = vpop.f32.mrf.mxu0
    %v856 = vadd.f32 0.0, %v855
    %857 = vdwg.mxu0
    %858 = vmatpush.xpose.msra.mxu0 0.0
    %859 = vmatpush.xpose.msra.mxu0 0.0
    %860 = vmatpush.xpose.msra.mxu0 0.0
    %861 = vmatpush.xpose.msra.mxu0 0.0
    %862 = vmatpush.xpose.msra.mxu0 0.0
    %863 = vmatpush.xpose.msra.mxu0 0.0
    %864 = vmatpush.xpose.msra.mxu0 0.0
    %865 = vmatpush.xpose.msra.mxu0 0.0
    %866 = vmatpush.xpose.msra.mxu0 0.0
    %867 = vmatpush.xpose.msra.mxu0 0.0
    %868 = vmatpush.xpose.msra.mxu0 0.0
    %869 = vmatpush.xpose.msra.mxu0 0.0
    %870 = vmatpush.xpose.msra.mxu0 0.0
    %871 = vmatpush.xpose.msra.mxu0 0.0
    %872 = vmatpush.xpose.msra.mxu0 0.0
    %873 = vmatpush.xpose.msra.mxu0 %v408
    %874 = vmatmul.f32.gmra.mxu0 %v344
    %v875 = vpop.f32.mrf.mxu0
    %v876 = vadd.f32 0.0, %v875
    %877 = vdwg.mxu0
    %878 = vmatpush.xpose.msra.mxu0 0.0
    %879 = vmatpush.xpose.msra.mxu0 0.0
    %880 = vmatpush.xpose.msra.mxu0 0.0
    %881 = vmatpush.xpose.msra.mxu0 0.0
    %882 = vmatpush.xpose.msra.mxu0 0.0
    %883 = vmatpush.xpose.msra.mxu0 0.0
    %884 = vmatpush.xpose.msra.mxu0 0.0
    %885 = vmatpush.xpose.msra.mxu0 0.0
    %886 = vmatpush.xpose.msra.mxu0 0.0
    %887 = vmatpush.xpose.msra.mxu0 0.0
    %888 = vmatpush.xpose.msra.mxu0 0.0
    %889 = vmatpush.xpose.msra.mxu0 0.0
    %890 = vmatpush.xpose.msra.mxu0 0.0
    %891 = vmatpush.xpose.msra.mxu0 0.0
    %892 = vmatpush.xpose.msra.mxu0 0.0
    %893 = vmatpush.xpose.msra.mxu0 %v409
    %894 = vmatmul.f32.gmra.mxu0 %v345
    %v895 = vpop.f32.mrf.mxu0
    %v896 = vadd.f32 0.0, %v895
    %897 = vdwg.mxu0
    %898 = vmatpush.xpose.msra.mxu0 0.0
    %899 = vmatpush.xpose.msra.mxu0 0.0
    %900 = vmatpush.xpose.msra.mxu0 0.0
    %901 = vmatpush.xpose.msra.mxu0 0.0
    %902 = vmatpush.xpose.msra.mxu0 0.0
    %903 = vmatpush.xpose.msra.mxu0 0.0
    %904 = vmatpush.xpose.msra.mxu0 0.0
    %905 = vmatpush.xpose.msra.mxu0 0.0
    %906 = vmatpush.xpose.msra.mxu0 0.0
    %907 = vmatpush.xpose.msra.mxu0 0.0
    %908 = vmatpush.xpose.msra.mxu0 0.0
    %909 = vmatpush.xpose.msra.mxu0 0.0
    %910 = vmatpush.xpose.msra.mxu0 0.0
    %911 = vmatpush.xpose.msra.mxu0 0.0
    %912 = vmatpush.xpose.msra.mxu0 0.0
    %913 = vmatpush.xpose.msra.mxu0 %v410
    %914 = vmatmul.f32.gmra.mxu0 %v346
    %v915 = vpop.f32.mrf.mxu0
    %v916 = vadd.f32 0.0, %v915
    %917 = vdwg.mxu0
    %918 = vmatpush.xpose.msra.mxu0 0.0
    %919 = vmatpush.xpose.msra.mxu0 0.0
    %920 = vmatpush.xpose.msra.mxu0 0.0
    %921 = vmatpush.xpose.msra.mxu0 0.0
    %922 = vmatpush.xpose.msra.mxu0 0.0
    %923 = vmatpush.xpose.msra.mxu0 0.0
    %924 = vmatpush.xpose.msra.mxu0 0.0
    %925 = vmatpush.xpose.msra.mxu0 0.0
    %926 = vmatpush.xpose.msra.mxu0 0.0
    %927 = vmatpush.xpose.msra.mxu0 0.0
    %928 = vmatpush.xpose.msra.mxu0 0.0
    %929 = vmatpush.xpose.msra.mxu0 0.0
    %930 = vmatpush.xpose.msra.mxu0 0.0
    %931 = vmatpush.xpose.msra.mxu0 0.0
    %932 = vmatpush.xpose.msra.mxu0 0.0
    %933 = vmatpush.xpose.msra.mxu0 %v411
    %934 = vmatmul.f32.gmra.mxu0 %v347
    %v935 = vpop.f32.mrf.mxu0
    %v936 = vadd.f32 0.0, %v935
    %937 = vdwg.mxu0
    %938 = vmatpush.xpose.msra.mxu0 0.0
    %939 = vmatpush.xpose.msra.mxu0 0.0
    %940 = vmatpush.xpose.msra.mxu0 0.0
    %941 = vmatpush.xpose.msra.mxu0 0.0
    %942 = vmatpush.xpose.msra.mxu0 0.0
    %943 = vmatpush.xpose.msra.mxu0 0.0
    %944 = vmatpush.xpose.msra.mxu0 0.0
    %945 = vmatpush.xpose.msra.mxu0 0.0
    %946 = vmatpush.xpose.msra.mxu0 0.0
    %947 = vmatpush.xpose.msra.mxu0 0.0
    %948 = vmatpush.xpose.msra.mxu0 0.0
    %949 = vmatpush.xpose.msra.mxu0 0.0
    %950 = vmatpush.xpose.msra.mxu0 0.0
    %951 = vmatpush.xpose.msra.mxu0 0.0
    %952 = vmatpush.xpose.msra.mxu0 0.0
    %953 = vmatpush.xpose.msra.mxu0 %v412
    %954 = vmatmul.f32.gmra.mxu0 %v348
    %v955 = vpop.f32.mrf.mxu0
    %v956 = vadd.f32 0.0, %v955
    %957 = vdwg.mxu0
    %958 = vmatpush.xpose.msra.mxu0 0.0
    %959 = vmatpush.xpose.msra.mxu0 0.0
    %960 = vmatpush.xpose.msra.mxu0 0.0
    %961 = vmatpush.xpose.msra.mxu0 0.0
    %962 = vmatpush.xpose.msra.mxu0 0.0
    %963 = vmatpush.xpose.msra.mxu0 0.0
    %964 = vmatpush.xpose.msra.mxu0 0.0
    %965 = vmatpush.xpose.msra.mxu0 0.0
    %966 = vmatpush.xpose.msra.mxu0 0.0
    %967 = vmatpush.xpose.msra.mxu0 0.0
    %968 = vmatpush.xpose.msra.mxu0 0.0
    %969 = vmatpush.xpose.msra.mxu0 0.0
    %970 = vmatpush.xpose.msra.mxu0 0.0
    %971 = vmatpush.xpose.msra.mxu0 0.0
    %972 = vmatpush.xpose.msra.mxu0 0.0
    %973 = vmatpush.xpose.msra.mxu0 %v413
    %974 = vmatmul.f32.gmra.mxu0 %v349
    %v975 = vpop.f32.mrf.mxu0
    %v976 = vadd.f32 0.0, %v975
    %977 = vdwg.mxu0
    %978 = vmatpush.xpose.msra.mxu0 0.0
    %979 = vmatpush.xpose.msra.mxu0 0.0
    %980 = vmatpush.xpose.msra.mxu0 0.0
    %981 = vmatpush.xpose.msra.mxu0 0.0
    %982 = vmatpush.xpose.msra.mxu0 0.0
    %983 = vmatpush.xpose.msra.mxu0 0.0
    %984 = vmatpush.xpose.msra.mxu0 0.0
    %985 = vmatpush.xpose.msra.mxu0 0.0
    %986 = vmatpush.xpose.msra.mxu0 0.0
    %987 = vmatpush.xpose.msra.mxu0 0.0
    %988 = vmatpush.xpose.msra.mxu0 0.0
    %989 = vmatpush.xpose.msra.mxu0 0.0
    %990 = vmatpush.xpose.msra.mxu0 0.0
    %991 = vmatpush.xpose.msra.mxu0 0.0
    %992 = vmatpush.xpose.msra.mxu0 0.0
    %993 = vmatpush.xpose.msra.mxu0 %v414
    %994 = vmatmul.f32.gmra.mxu0 %v350
    %v995 = vpop.f32.mrf.mxu0
    %v996 = vadd.f32 0.0, %v995
    %997 = vdwg.mxu0
    %998 = vmatpush.xpose.msra.mxu0 0.0
    %999 = vmatpush.xpose.msra.mxu0 0.0
    %1000 = vmatpush.xpose.msra.mxu0 0.0
    %1001 = vmatpush.xpose.msra.mxu0 0.0
    %1002 = vmatpush.xpose.msra.mxu0 0.0
    %1003 = vmatpush.xpose.msra.mxu0 0.0
    %1004 = vmatpush.xpose.msra.mxu0 0.0
    %1005 = vmatpush.xpose.msra.mxu0 0.0
    %1006 = vmatpush.xpose.msra.mxu0 0.0
    %1007 = vmatpush.xpose.msra.mxu0 0.0
    %1008 = vmatpush.xpose.msra.mxu0 0.0
    %1009 = vmatpush.xpose.msra.mxu0 0.0
    %1010 = vmatpush.xpose.msra.mxu0 0.0
    %1011 = vmatpush.xpose.msra.mxu0 0.0
    %1012 = vmatpush.xpose.msra.mxu0 0.0
    %1013 = vmatpush.xpose.msra.mxu0 %v415
    %1014 = vmatmul.f32.gmra.mxu0 %v351
    %v1015 = vpop.f32.mrf.mxu0
    %v1016 = vadd.f32 0.0, %v1015
    %1017 = vdwg.mxu0
    %1018 = vmatpush.xpose.msra.mxu0 0.0
    %1019 = vmatpush.xpose.msra.mxu0 0.0
    %1020 = vmatpush.xpose.msra.mxu0 0.0
    %1021 = vmatpush.xpose.msra.mxu0 0.0
    %1022 = vmatpush.xpose.msra.mxu0 0.0
    %1023 = vmatpush.xpose.msra.mxu0 0.0
    %1024 = vmatpush.xpose.msra.mxu0 0.0
    %1025 = vmatpush.xpose.msra.mxu0 0.0
    %1026 = vmatpush.xpose.msra.mxu0 0.0
    %1027 = vmatpush.xpose.msra.mxu0 0.0
    %1028 = vmatpush.xpose.msra.mxu0 0.0
    %1029 = vmatpush.xpose.msra.mxu0 0.0
    %1030 = vmatpush.xpose.msra.mxu0 0.0
    %1031 = vmatpush.xpose.msra.mxu0 0.0
    %1032 = vmatpush.xpose.msra.mxu0 0.0
    %1033 = vmatpush.xpose.msra.mxu0 %v416
    %1034 = vmatmul.f32.gmra.mxu0 %v352
    %v1035 = vpop.f32.mrf.mxu0
    %v1036 = vadd.f32 0.0, %v1035
    %1037 = vdwg.mxu0
    %1038 = vmatpush.xpose.msra.mxu0 0.0
    %1039 = vmatpush.xpose.msra.mxu0 0.0
    %1040 = vmatpush.xpose.msra.mxu0 0.0
    %1041 = vmatpush.xpose.msra.mxu0 0.0
    %1042 = vmatpush.xpose.msra.mxu0 0.0
    %1043 = vmatpush.xpose.msra.mxu0 0.0
    %1044 = vmatpush.xpose.msra.mxu0 0.0
    %1045 = vmatpush.xpose.msra.mxu0 0.0
    %1046 = vmatpush.xpose.msra.mxu0 0.0
    %1047 = vmatpush.xpose.msra.mxu0 0.0
    %1048 = vmatpush.xpose.msra.mxu0 0.0
    %1049 = vmatpush.xpose.msra.mxu0 0.0
    %1050 = vmatpush.xpose.msra.mxu0 0.0
    %1051 = vmatpush.xpose.msra.mxu0 0.0
    %1052 = vmatpush.xpose.msra.mxu0 0.0
    %1053 = vmatpush.xpose.msra.mxu0 %v417
    %1054 = vmatmul.f32.gmra.mxu0 %v353
    %v1055 = vpop.f32.mrf.mxu0
    %v1056 = vadd.f32 0.0, %v1055
    %1057 = vdwg.mxu0
    %v1058 = vmul.f32 %v436, 0.2
    %v1059 = vmul.f32 %v456, 0.2
    %v1060 = vmul.f32 %v476, 0.2
    %v1061 = vmul.f32 %v496, 0.2
    %v1062 = vmul.f32 %v516, 0.2
    %v1063 = vmul.f32 %v536, 0.2
    %v1064 = vmul.f32 %v556, 0.2
    %v1065 = vmul.f32 %v576, 0.2
    %v1066 = vmul.f32 %v596, 0.2
    %v1067 = vmul.f32 %v616, 0.2
    %v1068 = vmul.f32 %v636, 0.2
    %v1069 = vmul.f32 %v656, 0.2
    %v1070 = vmul.f32 %v676, 0.2
    %v1071 = vmul.f32 %v696, 0.2
    %v1072 = vmul.f32 %v716, 0.2
    %v1073 = vmul.f32 %v736, 0.2
    %v1074 = vmul.f32 %v756, 0.2
    %v1075 = vmul.f32 %v776, 0.2
    %v1076 = vmul.f32 %v796, 0.2
    %v1077 = vmul.f32 %v816, 0.2
    %v1078 = vmul.f32 %v836, 0.2
    %v1079 = vmul.f32 %v856, 0.2
    %v1080 = vmul.f32 %v876, 0.2
    %v1081 = vmul.f32 %v896, 0.2
    %v1082 = vmul.f32 %v916, 0.2
    %v1083 = vmul.f32 %v936, 0.2
    %v1084 = vmul.f32 %v956, 0.2
    %v1085 = vmul.f32 %v976, 0.2
    %v1086 = vmul.f32 %v996, 0.2
    %v1087 = vmul.f32 %v1016, 0.2
    %v1088 = vmul.f32 %v1036, 0.2
    %v1089 = vmul.f32 %v1056, 0.2
    %v1090 = vmax.f32 %v436, %v1058
    %v1091 = vmax.f32 %v456, %v1059
    %v1092 = vmax.f32 %v476, %v1060
    %v1093 = vmax.f32 %v496, %v1061
    %v1094 = vmax.f32 %v516, %v1062
    %v1095 = vmax.f32 %v536, %v1063
    %v1096 = vmax.f32 %v556, %v1064
    %v1097 = vmax.f32 %v576, %v1065
    %v1098 = vmax.f32 %v596, %v1066
    %v1099 = vmax.f32 %v616, %v1067
    %v1100 = vmax.f32 %v636, %v1068
    %v1101 = vmax.f32 %v656, %v1069
    %v1102 = vmax.f32 %v676, %v1070
    %v1103 = vmax.f32 %v696, %v1071
    %v1104 = vmax.f32 %v716, %v1072
    %v1105 = vmax.f32 %v736, %v1073
    %v1106 = vmax.f32 %v756, %v1074
    %v1107 = vmax.f32 %v776, %v1075
    %v1108 = vmax.f32 %v796, %v1076
    %v1109 = vmax.f32 %v816, %v1077
    %v1110 = vmax.f32 %v836, %v1078
    %v1111 = vmax.f32 %v856, %v1079
    %v1112 = vmax.f32 %v876, %v1080
    %v1113 = vmax.f32 %v896, %v1081
    %v1114 = vmax.f32 %v916, %v1082
    %v1115 = vmax.f32 %v936, %v1083
    %v1116 = vmax.f32 %v956, %v1084
    %v1117 = vmax.f32 %v976, %v1085
    %v1118 = vmax.f32 %v996, %v1086
    %v1119 = vmax.f32 %v1016, %v1087
    %v1120 = vmax.f32 %v1036, %v1088
    %v1121 = vmax.f32 %v1056, %v1089
    %v1122 = vld [vmem:[%s1] sm:$0xff]
    %v1123 = vld [vmem:[%s1 + $0x8] sm:$0xff]
    %v1124 = vld [vmem:[%s1 + $0x10] sm:$0xff]
    %v1125 = vld [vmem:[%s1 + $0x18] sm:$0xff]
    %v1126 = vld [vmem:[%s1 + $0x20] sm:$0xff]
    %v1127 = vld [vmem:[%s1 + $0x28] sm:$0xff]
    %v1128 = vld [vmem:[%s1 + $0x30] sm:$0xff]
    %v1129 = vld [vmem:[%s1 + $0x38] sm:$0xff]
    %v1130 = vld [vmem:[%s1 + $0x40] sm:$0xff]
    %v1131 = vld [vmem:[%s1 + $0x48] sm:$0xff]
    %v1132 = vld [vmem:[%s1 + $0x50] sm:$0xff]
    %v1133 = vld [vmem:[%s1 + $0x58] sm:$0xff]
    %v1134 = vld [vmem:[%s1 + $0x60] sm:$0xff]
    %v1135 = vld [vmem:[%s1 + $0x68] sm:$0xff]
    %v1136 = vld [vmem:[%s1 + $0x70] sm:$0xff]
    %v1137 = vld [vmem:[%s1 + $0x78] sm:$0xff]
    %v1138 = vld [vmem:[%s1 + $0x80] sm:$0xff]
    %v1139 = vld [vmem:[%s1 + $0x88] sm:$0xff]
    %v1140 = vld [vmem:[%s1 + $0x90] sm:$0xff]
    %v1141 = vld [vmem:[%s1 + $0x98] sm:$0xff]
    %v1142 = vld [vmem:[%s1 + $0xa0] sm:$0xff]
    %v1143 = vld [vmem:[%s1 + $0xa8] sm:$0xff]
    %v1144 = vld [vmem:[%s1 + $0xb0] sm:$0xff]
    %v1145 = vld [vmem:[%s1 + $0xb8] sm:$0xff]
    %v1146 = vld [vmem:[%s1 + $0xc0] sm:$0xff]
    %v1147 = vld [vmem:[%s1 + $0xc8] sm:$0xff]
    %v1148 = vld [vmem:[%s1 + $0xd0] sm:$0xff]
    %v1149 = vld [vmem:[%s1 + $0xd8] sm:$0xff]
    %v1150 = vld [vmem:[%s1 + $0xe0] sm:$0xff]
    %v1151 = vld [vmem:[%s1 + $0xe8] sm:$0xff]
    %v1152 = vld [vmem:[%s1 + $0xf0] sm:$0xff]
    %v1153 = vld [vmem:[%s1 + $0xf8] sm:$0xff]
    %vm1154 = vcmp.gt.f32.partialorder %v1122, 0.0
    %vm1155 = vcmp.gt.f32.partialorder %v1123, 0.0
    %vm1156 = vcmp.gt.f32.partialorder %v1124, 0.0
    %vm1157 = vcmp.gt.f32.partialorder %v1125, 0.0
    %vm1158 = vcmp.gt.f32.partialorder %v1126, 0.0
    %vm1159 = vcmp.gt.f32.partialorder %v1127, 0.0
    %vm1160 = vcmp.gt.f32.partialorder %v1128, 0.0
    %vm1161 = vcmp.gt.f32.partialorder %v1129, 0.0
    %vm1162 = vcmp.gt.f32.partialorder %v1130, 0.0
    %vm1163 = vcmp.gt.f32.partialorder %v1131, 0.0
    %vm1164 = vcmp.gt.f32.partialorder %v1132, 0.0
    %vm1165 = vcmp.gt.f32.partialorder %v1133, 0.0
    %vm1166 = vcmp.gt.f32.partialorder %v1134, 0.0
    %vm1167 = vcmp.gt.f32.partialorder %v1135, 0.0
    %vm1168 = vcmp.gt.f32.partialorder %v1136, 0.0
    %vm1169 = vcmp.gt.f32.partialorder %v1137, 0.0
    %vm1170 = vcmp.gt.f32.partialorder %v1138, 0.0
    %vm1171 = vcmp.gt.f32.partialorder %v1139, 0.0
    %vm1172 = vcmp.gt.f32.partialorder %v1140, 0.0
    %vm1173 = vcmp.gt.f32.partialorder %v1141, 0.0
    %vm1174 = vcmp.gt.f32.partialorder %v1142, 0.0
    %vm1175 = vcmp.gt.f32.partialorder %v1143, 0.0
    %vm1176 = vcmp.gt.f32.partialorder %v1144, 0.0
    %vm1177 = vcmp.gt.f32.partialorder %v1145, 0.0
    %vm1178 = vcmp.gt.f32.partialorder %v1146, 0.0
    %vm1179 = vcmp.gt.f32.partialorder %v1147, 0.0
    %vm1180 = vcmp.gt.f32.partialorder %v1148, 0.0
    %vm1181 = vcmp.gt.f32.partialorder %v1149, 0.0
    %vm1182 = vcmp.gt.f32.partialorder %v1150, 0.0
    %vm1183 = vcmp.gt.f32.partialorder %v1151, 0.0
    %vm1184 = vcmp.gt.f32.partialorder %v1152, 0.0
    %vm1185 = vcmp.gt.f32.partialorder %v1153, 0.0
    %v1186 = vsel %vm1154, %v1090, -9e+15
    %v1187 = vsel %vm1155, %v1091, -9e+15
    %v1188 = vsel %vm1156, %v1092, -9e+15
    %v1189 = vsel %vm1157, %v1093, -9e+15
    %v1190 = vsel %vm1158, %v1094, -9e+15
    %v1191 = vsel %vm1159, %v1095, -9e+15
    %v1192 = vsel %vm1160, %v1096, -9e+15
    %v1193 = vsel %vm1161, %v1097, -9e+15
    %v1194 = vsel %vm1162, %v1098, -9e+15
    %v1195 = vsel %vm1163, %v1099, -9e+15
    %v1196 = vsel %vm1164, %v1100, -9e+15
    %v1197 = vsel %vm1165, %v1101, -9e+15
    %v1198 = vsel %vm1166, %v1102, -9e+15
    %v1199 = vsel %vm1167, %v1103, -9e+15
    %v1200 = vsel %vm1168, %v1104, -9e+15
    %v1201 = vsel %vm1169, %v1105, -9e+15
    %v1202 = vsel %vm1170, %v1106, -9e+15
    %v1203 = vsel %vm1171, %v1107, -9e+15
    %v1204 = vsel %vm1172, %v1108, -9e+15
    %v1205 = vsel %vm1173, %v1109, -9e+15
    %v1206 = vsel %vm1174, %v1110, -9e+15
    %v1207 = vsel %vm1175, %v1111, -9e+15
    %v1208 = vsel %vm1176, %v1112, -9e+15
    %v1209 = vsel %vm1177, %v1113, -9e+15
    %v1210 = vsel %vm1178, %v1114, -9e+15
    %v1211 = vsel %vm1179, %v1115, -9e+15
    %v1212 = vsel %vm1180, %v1116, -9e+15
    %v1213 = vsel %vm1181, %v1117, -9e+15
    %v1214 = vsel %vm1182, %v1118, -9e+15
    %v1215 = vsel %vm1183, %v1119, -9e+15
    %v1216 = vsel %vm1184, %v1120, -9e+15
    %v1217 = vsel %vm1185, %v1121, -9e+15
    %vm1218 = vcmask 64512
    %v1219 = vsel %vm1218, %v1186, -inf
    %1220 = vmax.xlane.f32.xlu0 %v1219
    %v1221 = vpop.xlane.xlu0 %1220
    %v1222 = vsel %vm1218, %v1187, -inf
    %1223 = vmax.xlane.f32.xlu0 %v1222
    %v1224 = vpop.xlane.xlu0 %1223
    %v1225 = vsel %vm1218, %v1188, -inf
    %1226 = vmax.xlane.f32.xlu0 %v1225
    %v1227 = vpop.xlane.xlu0 %1226
    %v1228 = vsel %vm1218, %v1189, -inf
    %1229 = vmax.xlane.f32.xlu0 %v1228
    %v1230 = vpop.xlane.xlu0 %1229
    %v1231 = vsel %vm1218, %v1190, -inf
    %1232 = vmax.xlane.f32.xlu0 %v1231
    %v1233 = vpop.xlane.xlu0 %1232
    %v1234 = vsel %vm1218, %v1191, -inf
    %1235 = vmax.xlane.f32.xlu0 %v1234
    %v1236 = vpop.xlane.xlu0 %1235
    %v1237 = vsel %vm1218, %v1192, -inf
    %1238 = vmax.xlane.f32.xlu0 %v1237
    %v1239 = vpop.xlane.xlu0 %1238
    %v1240 = vsel %vm1218, %v1193, -inf
    %1241 = vmax.xlane.f32.xlu0 %v1240
    %v1242 = vpop.xlane.xlu0 %1241
    %v1243 = vsel %vm1218, %v1194, -inf
    %1244 = vmax.xlane.f32.xlu0 %v1243
    %v1245 = vpop.xlane.xlu0 %1244
    %v1246 = vsel %vm1218, %v1195, -inf
    %1247 = vmax.xlane.f32.xlu0 %v1246
    %v1248 = vpop.xlane.xlu0 %1247
    %v1249 = vsel %vm1218, %v1196, -inf
    %1250 = vmax.xlane.f32.xlu0 %v1249
    %v1251 = vpop.xlane.xlu0 %1250
    %v1252 = vsel %vm1218, %v1197, -inf
    %1253 = vmax.xlane.f32.xlu0 %v1252
    %v1254 = vpop.xlane.xlu0 %1253
    %v1255 = vsel %vm1218, %v1198, -inf
    %1256 = vmax.xlane.f32.xlu0 %v1255
    %v1257 = vpop.xlane.xlu0 %1256
    %v1258 = vsel %vm1218, %v1199, -inf
    %1259 = vmax.xlane.f32.xlu0 %v1258
    %v1260 = vpop.xlane.xlu0 %1259
    %v1261 = vsel %vm1218, %v1200, -inf
    %1262 = vmax.xlane.f32.xlu0 %v1261
    %v1263 = vpop.xlane.xlu0 %1262
    %v1264 = vsel %vm1218, %v1201, -inf
    %1265 = vmax.xlane.f32.xlu0 %v1264
    %v1266 = vpop.xlane.xlu0 %1265
    %v1267 = vsel %vm1218, %v1202, -inf
    %1268 = vmax.xlane.f32.xlu0 %v1267
    %v1269 = vpop.xlane.xlu0 %1268
    %v1270 = vsel %vm1218, %v1203, -inf
    %1271 = vmax.xlane.f32.xlu0 %v1270
    %v1272 = vpop.xlane.xlu0 %1271
    %v1273 = vsel %vm1218, %v1204, -inf
    %1274 = vmax.xlane.f32.xlu0 %v1273
    %v1275 = vpop.xlane.xlu0 %1274
    %v1276 = vsel %vm1218, %v1205, -inf
    %1277 = vmax.xlane.f32.xlu0 %v1276
    %v1278 = vpop.xlane.xlu0 %1277
    %v1279 = vsel %vm1218, %v1206, -inf
    %1280 = vmax.xlane.f32.xlu0 %v1279
    %v1281 = vpop.xlane.xlu0 %1280
    %v1282 = vsel %vm1218, %v1207, -inf
    %1283 = vmax.xlane.f32.xlu0 %v1282
    %v1284 = vpop.xlane.xlu0 %1283
    %v1285 = vsel %vm1218, %v1208, -inf
    %1286 = vmax.xlane.f32.xlu0 %v1285
    %v1287 = vpop.xlane.xlu0 %1286
    %v1288 = vsel %vm1218, %v1209, -inf
    %1289 = vmax.xlane.f32.xlu0 %v1288
    %v1290 = vpop.xlane.xlu0 %1289
    %v1291 = vsel %vm1218, %v1210, -inf
    %1292 = vmax.xlane.f32.xlu0 %v1291
    %v1293 = vpop.xlane.xlu0 %1292
    %v1294 = vsel %vm1218, %v1211, -inf
    %1295 = vmax.xlane.f32.xlu0 %v1294
    %v1296 = vpop.xlane.xlu0 %1295
    %v1297 = vsel %vm1218, %v1212, -inf
    %1298 = vmax.xlane.f32.xlu0 %v1297
    %v1299 = vpop.xlane.xlu0 %1298
    %v1300 = vsel %vm1218, %v1213, -inf
    %1301 = vmax.xlane.f32.xlu0 %v1300
    %v1302 = vpop.xlane.xlu0 %1301
    %v1303 = vsel %vm1218, %v1214, -inf
    %1304 = vmax.xlane.f32.xlu0 %v1303
    %v1305 = vpop.xlane.xlu0 %1304
    %v1306 = vsel %vm1218, %v1215, -inf
    %1307 = vmax.xlane.f32.xlu0 %v1306
    %v1308 = vpop.xlane.xlu0 %1307
    %v1309 = vsel %vm1218, %v1216, -inf
    %1310 = vmax.xlane.f32.xlu0 %v1309
    %v1311 = vpop.xlane.xlu0 %1310
    %v1312 = vsel %vm1218, %v1217, -inf
    %1313 = vmax.xlane.f32.xlu0 %v1312
    %v1314 = vpop.xlane.xlu0 %1313
    %v1315 = vsub.f32 %v1186, %v1221
    %v1316 = vsub.f32 %v1187, %v1224
    %v1317 = vsub.f32 %v1188, %v1227
    %v1318 = vsub.f32 %v1189, %v1230
    %v1319 = vsub.f32 %v1190, %v1233
    %v1320 = vsub.f32 %v1191, %v1236
    %v1321 = vsub.f32 %v1192, %v1239
    %v1322 = vsub.f32 %v1193, %v1242
    %v1323 = vsub.f32 %v1194, %v1245
    %v1324 = vsub.f32 %v1195, %v1248
    %v1325 = vsub.f32 %v1196, %v1251
    %v1326 = vsub.f32 %v1197, %v1254
    %v1327 = vsub.f32 %v1198, %v1257
    %v1328 = vsub.f32 %v1199, %v1260
    %v1329 = vsub.f32 %v1200, %v1263
    %v1330 = vsub.f32 %v1201, %v1266
    %v1331 = vsub.f32 %v1202, %v1269
    %v1332 = vsub.f32 %v1203, %v1272
    %v1333 = vsub.f32 %v1204, %v1275
    %v1334 = vsub.f32 %v1205, %v1278
    %v1335 = vsub.f32 %v1206, %v1281
    %v1336 = vsub.f32 %v1207, %v1284
    %v1337 = vsub.f32 %v1208, %v1287
    %v1338 = vsub.f32 %v1209, %v1290
    %v1339 = vsub.f32 %v1210, %v1293
    %v1340 = vsub.f32 %v1211, %v1296
    %v1341 = vsub.f32 %v1212, %v1299
    %v1342 = vsub.f32 %v1213, %v1302
    %v1343 = vsub.f32 %v1214, %v1305
    %v1344 = vsub.f32 %v1215, %v1308
    %v1345 = vsub.f32 %v1216, %v1311
    %v1346 = vsub.f32 %v1217, %v1314
    %v1347 = vmul.f32 %v1315, 1.442695
    %v1348 = vpow.pop %v1347
    %v1349 = vmul.f32 %v1316, 1.442695
    %v1350 = vpow.pop %v1349
    %v1351 = vmul.f32 %v1317, 1.442695
    %v1352 = vpow.pop %v1351
    %v1353 = vmul.f32 %v1318, 1.442695
    %v1354 = vpow.pop %v1353
    %v1355 = vmul.f32 %v1319, 1.442695
    %v1356 = vpow.pop %v1355
    %v1357 = vmul.f32 %v1320, 1.442695
    %v1358 = vpow.pop %v1357
    %v1359 = vmul.f32 %v1321, 1.442695
    %v1360 = vpow.pop %v1359
    %v1361 = vmul.f32 %v1322, 1.442695
    %v1362 = vpow.pop %v1361
    %v1363 = vmul.f32 %v1323, 1.442695
    %v1364 = vpow.pop %v1363
    %v1365 = vmul.f32 %v1324, 1.442695
    %v1366 = vpow.pop %v1365
    %v1367 = vmul.f32 %v1325, 1.442695
    %v1368 = vpow.pop %v1367
    %v1369 = vmul.f32 %v1326, 1.442695
    %v1370 = vpow.pop %v1369
    %v1371 = vmul.f32 %v1327, 1.442695
    %v1372 = vpow.pop %v1371
    %v1373 = vmul.f32 %v1328, 1.442695
    %v1374 = vpow.pop %v1373
    %v1375 = vmul.f32 %v1329, 1.442695
    %v1376 = vpow.pop %v1375
    %v1377 = vmul.f32 %v1330, 1.442695
    %v1378 = vpow.pop %v1377
    %v1379 = vmul.f32 %v1331, 1.442695
    %v1380 = vpow.pop %v1379
    %v1381 = vmul.f32 %v1332, 1.442695
    %v1382 = vpow.pop %v1381
    %v1383 = vmul.f32 %v1333, 1.442695
    %v1384 = vpow.pop %v1383
    %v1385 = vmul.f32 %v1334, 1.442695
    %v1386 = vpow.pop %v1385
    %v1387 = vmul.f32 %v1335, 1.442695
    %v1388 = vpow.pop %v1387
    %v1389 = vmul.f32 %v1336, 1.442695
    %v1390 = vpow.pop %v1389
    %v1391 = vmul.f32 %v1337, 1.442695
    %v1392 = vpow.pop %v1391
    %v1393 = vmul.f32 %v1338, 1.442695
    %v1394 = vpow.pop %v1393
    %v1395 = vmul.f32 %v1339, 1.442695
    %v1396 = vpow.pop %v1395
    %v1397 = vmul.f32 %v1340, 1.442695
    %v1398 = vpow.pop %v1397
    %v1399 = vmul.f32 %v1341, 1.442695
    %v1400 = vpow.pop %v1399
    %v1401 = vmul.f32 %v1342, 1.442695
    %v1402 = vpow.pop %v1401
    %v1403 = vmul.f32 %v1343, 1.442695
    %v1404 = vpow.pop %v1403
    %v1405 = vmul.f32 %v1344, 1.442695
    %v1406 = vpow.pop %v1405
    %v1407 = vmul.f32 %v1345, 1.442695
    %v1408 = vpow.pop %v1407
    %v1409 = vmul.f32 %v1346, 1.442695
    %v1410 = vpow.pop %v1409
    %v1411 = vsel %vm1218, %v1348, 0.0
    %1412 = vadd.xlane.f32.xlu0 %v1411
    %v1413 = vpop.xlane.xlu0 %1412
    %v1414 = vsel %vm1218, %v1350, 0.0
    %1415 = vadd.xlane.f32.xlu0 %v1414
    %v1416 = vpop.xlane.xlu0 %1415
    %v1417 = vsel %vm1218, %v1352, 0.0
    %1418 = vadd.xlane.f32.xlu0 %v1417
    %v1419 = vpop.xlane.xlu0 %1418
    %v1420 = vsel %vm1218, %v1354, 0.0
    %1421 = vadd.xlane.f32.xlu0 %v1420
    %v1422 = vpop.xlane.xlu0 %1421
    %v1423 = vsel %vm1218, %v1356, 0.0
    %1424 = vadd.xlane.f32.xlu0 %v1423
    %v1425 = vpop.xlane.xlu0 %1424
    %v1426 = vsel %vm1218, %v1358, 0.0
    %1427 = vadd.xlane.f32.xlu0 %v1426
    %v1428 = vpop.xlane.xlu0 %1427
    %v1429 = vsel %vm1218, %v1360, 0.0
    %1430 = vadd.xlane.f32.xlu0 %v1429
    %v1431 = vpop.xlane.xlu0 %1430
    %v1432 = vsel %vm1218, %v1362, 0.0
    %1433 = vadd.xlane.f32.xlu0 %v1432
    %v1434 = vpop.xlane.xlu0 %1433
    %v1435 = vsel %vm1218, %v1364, 0.0
    %1436 = vadd.xlane.f32.xlu0 %v1435
    %v1437 = vpop.xlane.xlu0 %1436
    %v1438 = vsel %vm1218, %v1366, 0.0
    %1439 = vadd.xlane.f32.xlu0 %v1438
    %v1440 = vpop.xlane.xlu0 %1439
    %v1441 = vsel %vm1218, %v1368, 0.0
    %1442 = vadd.xlane.f32.xlu0 %v1441
    %v1443 = vpop.xlane.xlu0 %1442
    %v1444 = vsel %vm1218, %v1370, 0.0
    %1445 = vadd.xlane.f32.xlu0 %v1444
    %v1446 = vpop.xlane.xlu0 %1445
    %v1447 = vsel %vm1218, %v1372, 0.0
    %1448 = vadd.xlane.f32.xlu0 %v1447
    %v1449 = vpop.xlane.xlu0 %1448
    %v1450 = vsel %vm1218, %v1374, 0.0
    %1451 = vadd.xlane.f32.xlu0 %v1450
    %v1452 = vpop.xlane.xlu0 %1451
    %v1453 = vsel %vm1218, %v1376, 0.0
    %1454 = vadd.xlane.f32.xlu0 %v1453
    %v1455 = vpop.xlane.xlu0 %1454
    %v1456 = vsel %vm1218, %v1378, 0.0
    %1457 = vadd.xlane.f32.xlu0 %v1456
    %v1458 = vpop.xlane.xlu0 %1457
    %v1459 = vsel %vm1218, %v1380, 0.0
    %1460 = vadd.xlane.f32.xlu0 %v1459
    %v1461 = vpop.xlane.xlu0 %1460
    %v1462 = vsel %vm1218, %v1382, 0.0
    %1463 = vadd.xlane.f32.xlu0 %v1462
    %v1464 = vpop.xlane.xlu0 %1463
    %v1465 = vsel %vm1218, %v1384, 0.0
    %1466 = vadd.xlane.f32.xlu0 %v1465
    %v1467 = vpop.xlane.xlu0 %1466
    %v1468 = vsel %vm1218, %v1386, 0.0
    %1469 = vadd.xlane.f32.xlu0 %v1468
    %v1470 = vpop.xlane.xlu0 %1469
    %v1471 = vsel %vm1218, %v1388, 0.0
    %1472 = vadd.xlane.f32.xlu0 %v1471
    %v1473 = vpop.xlane.xlu0 %1472
    %v1474 = vsel %vm1218, %v1390, 0.0
    %1475 = vadd.xlane.f32.xlu0 %v1474
    %v1476 = vpop.xlane.xlu0 %1475
    %v1477 = vsel %vm1218, %v1392, 0.0
    %1478 = vadd.xlane.f32.xlu0 %v1477
    %v1479 = vpop.xlane.xlu0 %1478
    %v1480 = vsel %vm1218, %v1394, 0.0
    %1481 = vadd.xlane.f32.xlu0 %v1480
    %v1482 = vpop.xlane.xlu0 %1481
    %v1483 = vsel %vm1218, %v1396, 0.0
    %1484 = vadd.xlane.f32.xlu0 %v1483
    %v1485 = vpop.xlane.xlu0 %1484
    %v1486 = vsel %vm1218, %v1398, 0.0
    %1487 = vadd.xlane.f32.xlu0 %v1486
    %v1488 = vpop.xlane.xlu0 %1487
    %v1489 = vsel %vm1218, %v1400, 0.0
    %1490 = vadd.xlane.f32.xlu0 %v1489
    %v1491 = vpop.xlane.xlu0 %1490
    %v1492 = vsel %vm1218, %v1402, 0.0
    %1493 = vadd.xlane.f32.xlu0 %v1492
    %v1494 = vpop.xlane.xlu0 %1493
    %v1495 = vsel %vm1218, %v1404, 0.0
    %1496 = vadd.xlane.f32.xlu0 %v1495
    %v1497 = vpop.xlane.xlu0 %1496
    %v1498 = vsel %vm1218, %v1406, 0.0
    %1499 = vadd.xlane.f32.xlu0 %v1498
    %v1500 = vpop.xlane.xlu0 %1499
    %v1501 = vsel %vm1218, %v1408, 0.0
    %1502 = vadd.xlane.f32.xlu0 %v1501
    %v1503 = vpop.xlane.xlu0 %1502
    %v1504 = vsel %vm1218, %v1410, 0.0
    %1505 = vadd.xlane.f32.xlu0 %v1504
    %v1506 = vpop.xlane.xlu0 %1505
    %v1507 = vrcp.pop %v1413
    %v1508 = vrcp.pop %v1416
    %v1509 = vrcp.pop %v1419
    %v1510 = vrcp.pop %v1422
    %v1511 = vrcp.pop %v1425
    %v1512 = vrcp.pop %v1428
    %v1513 = vrcp.pop %v1431
    %v1514 = vrcp.pop %v1434
    %v1515 = vrcp.pop %v1437
    %v1516 = vrcp.pop %v1440
    %v1517 = vrcp.pop %v1443
    %v1518 = vrcp.pop %v1446
    %v1519 = vrcp.pop %v1449
    %v1520 = vrcp.pop %v1452
    %v1521 = vrcp.pop %v1455
    %v1522 = vrcp.pop %v1458
    %v1523 = vrcp.pop %v1461
    %v1524 = vrcp.pop %v1464
    %v1525 = vrcp.pop %v1467
    %v1526 = vrcp.pop %v1470
    %v1527 = vrcp.pop %v1473
    %v1528 = vrcp.pop %v1476
    %v1529 = vrcp.pop %v1479
    %v1530 = vrcp.pop %v1482
    %v1531 = vrcp.pop %v1485
    %v1532 = vrcp.pop %v1488
    %v1533 = vrcp.pop %v1491
    %v1534 = vrcp.pop %v1494
    %v1535 = vrcp.pop %v1497
    %v1536 = vrcp.pop %v1500
    %v1537 = vrcp.pop %v1503
    %v1538 = vrcp.pop %v1506
    %v1539 = vmul.f32 %v1348, %v1507
    %v1540 = vmul.f32 %v1350, %v1508
    %v1541 = vmul.f32 %v1352, %v1509
    %v1542 = vmul.f32 %v1354, %v1510
    %v1543 = vmul.f32 %v1356, %v1511
    %v1544 = vmul.f32 %v1358, %v1512
    %v1545 = vmul.f32 %v1360, %v1513
    %v1546 = vmul.f32 %v1362, %v1514
    %v1547 = vmul.f32 %v1364, %v1515
    %v1548 = vmul.f32 %v1366, %v1516
    %v1549 = vmul.f32 %v1368, %v1517
    %v1550 = vmul.f32 %v1370, %v1518
    %v1551 = vmul.f32 %v1372, %v1519
    %v1552 = vmul.f32 %v1374, %v1520
    %v1553 = vmul.f32 %v1376, %v1521
    %v1554 = vmul.f32 %v1378, %v1522
    %v1555 = vmul.f32 %v1380, %v1523
    %v1556 = vmul.f32 %v1382, %v1524
    %v1557 = vmul.f32 %v1384, %v1525
    %v1558 = vmul.f32 %v1386, %v1526
    %v1559 = vmul.f32 %v1388, %v1527
    %v1560 = vmul.f32 %v1390, %v1528
    %v1561 = vmul.f32 %v1392, %v1529
    %v1562 = vmul.f32 %v1394, %v1530
    %v1563 = vmul.f32 %v1396, %v1531
    %v1564 = vmul.f32 %v1398, %v1532
    %v1565 = vmul.f32 %v1400, %v1533
    %v1566 = vmul.f32 %v1402, %v1534
    %v1567 = vmul.f32 %v1404, %v1535
    %v1568 = vmul.f32 %v1406, %v1536
    %v1569 = vmul.f32 %v1408, %v1537
    %v1570 = vmul.f32 %v1410, %v1538
    %v1572 = vsel %vm1218, %v1539, 0
    %1574 = vmatpush.msra.mxu0 0.0
    %1575 = vmatpush.msra.mxu0 0.0
    %1576 = vmatpush.msra.mxu0 0.0
    %1577 = vmatpush.msra.mxu0 0.0
    %1578 = vmatpush.msra.mxu0 0.0
    %1579 = vmatpush.msra.mxu0 0.0
    %1580 = vmatpush.msra.mxu0 0.0
    %1581 = vmatpush.msra.mxu0 0.0
    %1582 = vmatpush.msra.mxu0 0.0
    %1583 = vmatpush.msra.mxu0 0.0
    %1584 = vmatpush.msra.mxu0 0.0
    %1585 = vmatpush.msra.mxu0 0.0
    %1586 = vmatpush.msra.mxu0 0.0
    %1587 = vmatpush.msra.mxu0 0.0
    %1588 = vmatpush.msra.mxu0 0.0
    %1589 = vmatpush.msra.mxu0 %v203
    %1590 = vmatmul.f32.gmra.mxu0 %v1572
    %v1591 = vpop.f32.mrf.mxu0
    %v1592 = vadd.f32 0.0, %v1591
    %1593 = vdwg.mxu0
    %v1595 = vsel %vm1218, %v1540, 0
    %1597 = vmatpush.msra.mxu0 0.0
    %1598 = vmatpush.msra.mxu0 0.0
    %1599 = vmatpush.msra.mxu0 0.0
    %1600 = vmatpush.msra.mxu0 0.0
    %1601 = vmatpush.msra.mxu0 0.0
    %1602 = vmatpush.msra.mxu0 0.0
    %1603 = vmatpush.msra.mxu0 0.0
    %1604 = vmatpush.msra.mxu0 0.0
    %1605 = vmatpush.msra.mxu0 0.0
    %1606 = vmatpush.msra.mxu0 0.0
    %1607 = vmatpush.msra.mxu0 0.0
    %1608 = vmatpush.msra.mxu0 0.0
    %1609 = vmatpush.msra.mxu0 0.0
    %1610 = vmatpush.msra.mxu0 0.0
    %1611 = vmatpush.msra.mxu0 0.0
    %1612 = vmatpush.msra.mxu0 %v205
    %1613 = vmatmul.f32.gmra.mxu0 %v1595
    %v1614 = vpop.f32.mrf.mxu0
    %v1615 = vadd.f32 0.0, %v1614
    %1616 = vdwg.mxu0
    %v1618 = vsel %vm1218, %v1541, 0
    %1620 = vmatpush.msra.mxu0 0.0
    %1621 = vmatpush.msra.mxu0 0.0
    %1622 = vmatpush.msra.mxu0 0.0
    %1623 = vmatpush.msra.mxu0 0.0
    %1624 = vmatpush.msra.mxu0 0.0
    %1625 = vmatpush.msra.mxu0 0.0
    %1626 = vmatpush.msra.mxu0 0.0
    %1627 = vmatpush.msra.mxu0 0.0
    %1628 = vmatpush.msra.mxu0 0.0
    %1629 = vmatpush.msra.mxu0 0.0
    %1630 = vmatpush.msra.mxu0 0.0
    %1631 = vmatpush.msra.mxu0 0.0
    %1632 = vmatpush.msra.mxu0 0.0
    %1633 = vmatpush.msra.mxu0 0.0
    %1634 = vmatpush.msra.mxu0 0.0
    %1635 = vmatpush.msra.mxu0 %v208
    %1636 = vmatmul.f32.gmra.mxu0 %v1618
    %v1637 = vpop.f32.mrf.mxu0
    %v1638 = vadd.f32 0.0, %v1637
    %1639 = vdwg.mxu0
    %v1641 = vsel %vm1218, %v1542, 0
    %1643 = vmatpush.msra.mxu0 0.0
    %1644 = vmatpush.msra.mxu0 0.0
    %1645 = vmatpush.msra.mxu0 0.0
    %1646 = vmatpush.msra.mxu0 0.0
    %1647 = vmatpush.msra.mxu0 0.0
    %1648 = vmatpush.msra.mxu0 0.0
    %1649 = vmatpush.msra.mxu0 0.0
    %1650 = vmatpush.msra.mxu0 0.0
    %1651 = vmatpush.msra.mxu0 0.0
    %1652 = vmatpush.msra.mxu0 0.0
    %1653 = vmatpush.msra.mxu0 0.0
    %1654 = vmatpush.msra.mxu0 0.0
    %1655 = vmatpush.msra.mxu0 0.0
    %1656 = vmatpush.msra.mxu0 0.0
    %1657 = vmatpush.msra.mxu0 0.0
    %1658 = vmatpush.msra.mxu0 %v210
    %1659 = vmatmul.f32.gmra.mxu0 %v1641
    %v1660 = vpop.f32.mrf.mxu0
    %v1661 = vadd.f32 0.0, %v1660
    %1662 = vdwg.mxu0
    %v1664 = vsel %vm1218, %v1543, 0
    %1666 = vmatpush.msra.mxu0 0.0
    %1667 = vmatpush.msra.mxu0 0.0
    %1668 = vmatpush.msra.mxu0 0.0
    %1669 = vmatpush.msra.mxu0 0.0
    %1670 = vmatpush.msra.mxu0 0.0
    %1671 = vmatpush.msra.mxu0 0.0
    %1672 = vmatpush.msra.mxu0 0.0
    %1673 = vmatpush.msra.mxu0 0.0
    %1674 = vmatpush.msra.mxu0 0.0
    %1675 = vmatpush.msra.mxu0 0.0
    %1676 = vmatpush.msra.mxu0 0.0
    %1677 = vmatpush.msra.mxu0 0.0
    %1678 = vmatpush.msra.mxu0 0.0
    %1679 = vmatpush.msra.mxu0 0.0
    %1680 = vmatpush.msra.mxu0 0.0
    %1681 = vmatpush.msra.mxu0 %v213
    %1682 = vmatmul.f32.gmra.mxu0 %v1664
    %v1683 = vpop.f32.mrf.mxu0
    %v1684 = vadd.f32 0.0, %v1683
    %1685 = vdwg.mxu0
    %v1687 = vsel %vm1218, %v1544, 0
    %1689 = vmatpush.msra.mxu0 0.0
    %1690 = vmatpush.msra.mxu0 0.0
    %1691 = vmatpush.msra.mxu0 0.0
    %1692 = vmatpush.msra.mxu0 0.0
    %1693 = vmatpush.msra.mxu0 0.0
    %1694 = vmatpush.msra.mxu0 0.0
    %1695 = vmatpush.msra.mxu0 0.0
    %1696 = vmatpush.msra.mxu0 0.0
    %1697 = vmatpush.msra.mxu0 0.0
    %1698 = vmatpush.msra.mxu0 0.0
    %1699 = vmatpush.msra.mxu0 0.0
    %1700 = vmatpush.msra.mxu0 0.0
    %1701 = vmatpush.msra.mxu0 0.0
    %1702 = vmatpush.msra.mxu0 0.0
    %1703 = vmatpush.msra.mxu0 0.0
    %1704 = vmatpush.msra.mxu0 %v215
    %1705 = vmatmul.f32.gmra.mxu0 %v1687
    %v1706 = vpop.f32.mrf.mxu0
    %v1707 = vadd.f32 0.0, %v1706
    %1708 = vdwg.mxu0
    %v1710 = vsel %vm1218, %v1545, 0
    %1712 = vmatpush.msra.mxu0 0.0
    %1713 = vmatpush.msra.mxu0 0.0
    %1714 = vmatpush.msra.mxu0 0.0
    %1715 = vmatpush.msra.mxu0 0.0
    %1716 = vmatpush.msra.mxu0 0.0
    %1717 = vmatpush.msra.mxu0 0.0
    %1718 = vmatpush.msra.mxu0 0.0
    %1719 = vmatpush.msra.mxu0 0.0
    %1720 = vmatpush.msra.mxu0 0.0
    %1721 = vmatpush.msra.mxu0 0.0
    %1722 = vmatpush.msra.mxu0 0.0
    %1723 = vmatpush.msra.mxu0 0.0
    %1724 = vmatpush.msra.mxu0 0.0
    %1725 = vmatpush.msra.mxu0 0.0
    %1726 = vmatpush.msra.mxu0 0.0
    %1727 = vmatpush.msra.mxu0 %v218
    %1728 = vmatmul.f32.gmra.mxu0 %v1710
    %v1729 = vpop.f32.mrf.mxu0
    %v1730 = vadd.f32 0.0, %v1729
    %1731 = vdwg.mxu0
    %v1733 = vsel %vm1218, %v1546, 0
    %1735 = vmatpush.msra.mxu0 0.0
    %1736 = vmatpush.msra.mxu0 0.0
    %1737 = vmatpush.msra.mxu0 0.0
    %1738 = vmatpush.msra.mxu0 0.0
    %1739 = vmatpush.msra.mxu0 0.0
    %1740 = vmatpush.msra.mxu0 0.0
    %1741 = vmatpush.msra.mxu0 0.0
    %1742 = vmatpush.msra.mxu0 0.0
    %1743 = vmatpush.msra.mxu0 0.0
    %1744 = vmatpush.msra.mxu0 0.0
    %1745 = vmatpush.msra.mxu0 0.0
    %1746 = vmatpush.msra.mxu0 0.0
    %1747 = vmatpush.msra.mxu0 0.0
    %1748 = vmatpush.msra.mxu0 0.0
    %1749 = vmatpush.msra.mxu0 0.0
    %1750 = vmatpush.msra.mxu0 %v220
    %1751 = vmatmul.f32.gmra.mxu0 %v1733
    %v1752 = vpop.f32.mrf.mxu0
    %v1753 = vadd.f32 0.0, %v1752
    %1754 = vdwg.mxu0
    %v1756 = vsel %vm1218, %v1547, 0
    %1758 = vmatpush.msra.mxu0 0.0
    %1759 = vmatpush.msra.mxu0 0.0
    %1760 = vmatpush.msra.mxu0 0.0
    %1761 = vmatpush.msra.mxu0 0.0
    %1762 = vmatpush.msra.mxu0 0.0
    %1763 = vmatpush.msra.mxu0 0.0
    %1764 = vmatpush.msra.mxu0 0.0
    %1765 = vmatpush.msra.mxu0 0.0
    %1766 = vmatpush.msra.mxu0 0.0
    %1767 = vmatpush.msra.mxu0 0.0
    %1768 = vmatpush.msra.mxu0 0.0
    %1769 = vmatpush.msra.mxu0 0.0
    %1770 = vmatpush.msra.mxu0 0.0
    %1771 = vmatpush.msra.mxu0 0.0
    %1772 = vmatpush.msra.mxu0 0.0
    %1773 = vmatpush.msra.mxu0 %v223
    %1774 = vmatmul.f32.gmra.mxu0 %v1756
    %v1775 = vpop.f32.mrf.mxu0
    %v1776 = vadd.f32 0.0, %v1775
    %1777 = vdwg.mxu0
    %v1779 = vsel %vm1218, %v1548, 0
    %1781 = vmatpush.msra.mxu0 0.0
    %1782 = vmatpush.msra.mxu0 0.0
    %1783 = vmatpush.msra.mxu0 0.0
    %1784 = vmatpush.msra.mxu0 0.0
    %1785 = vmatpush.msra.mxu0 0.0
    %1786 = vmatpush.msra.mxu0 0.0
    %1787 = vmatpush.msra.mxu0 0.0
    %1788 = vmatpush.msra.mxu0 0.0
    %1789 = vmatpush.msra.mxu0 0.0
    %1790 = vmatpush.msra.mxu0 0.0
    %1791 = vmatpush.msra.mxu0 0.0
    %1792 = vmatpush.msra.mxu0 0.0
    %1793 = vmatpush.msra.mxu0 0.0
    %1794 = vmatpush.msra.mxu0 0.0
    %1795 = vmatpush.msra.mxu0 0.0
    %1796 = vmatpush.msra.mxu0 %v225
    %1797 = vmatmul.f32.gmra.mxu0 %v1779
    %v1798 = vpop.f32.mrf.mxu0
    %v1799 = vadd.f32 0.0, %v1798
    %1800 = vdwg.mxu0
    %v1802 = vsel %vm1218, %v1549, 0
    %1804 = vmatpush.msra.mxu0 0.0
    %1805 = vmatpush.msra.mxu0 0.0
    %1806 = vmatpush.msra.mxu0 0.0
    %1807 = vmatpush.msra.mxu0 0.0
    %1808 = vmatpush.msra.mxu0 0.0
    %1809 = vmatpush.msra.mxu0 0.0
    %1810 = vmatpush.msra.mxu0 0.0
    %1811 = vmatpush.msra.mxu0 0.0
    %1812 = vmatpush.msra.mxu0 0.0
    %1813 = vmatpush.msra.mxu0 0.0
    %1814 = vmatpush.msra.mxu0 0.0
    %1815 = vmatpush.msra.mxu0 0.0
    %1816 = vmatpush.msra.mxu0 0.0
    %1817 = vmatpush.msra.mxu0 0.0
    %1818 = vmatpush.msra.mxu0 0.0
    %1819 = vmatpush.msra.mxu0 %v228
    %1820 = vmatmul.f32.gmra.mxu0 %v1802
    %v1821 = vpop.f32.mrf.mxu0
    %v1822 = vadd.f32 0.0, %v1821
    %1823 = vdwg.mxu0
    %v1825 = vsel %vm1218, %v1550, 0
    %1827 = vmatpush.msra.mxu0 0.0
    %1828 = vmatpush.msra.mxu0 0.0
    %1829 = vmatpush.msra.mxu0 0.0
    %1830 = vmatpush.msra.mxu0 0.0
    %1831 = vmatpush.msra.mxu0 0.0
    %1832 = vmatpush.msra.mxu0 0.0
    %1833 = vmatpush.msra.mxu0 0.0
    %1834 = vmatpush.msra.mxu0 0.0
    %1835 = vmatpush.msra.mxu0 0.0
    %1836 = vmatpush.msra.mxu0 0.0
    %1837 = vmatpush.msra.mxu0 0.0
    %1838 = vmatpush.msra.mxu0 0.0
    %1839 = vmatpush.msra.mxu0 0.0
    %1840 = vmatpush.msra.mxu0 0.0
    %1841 = vmatpush.msra.mxu0 0.0
    %1842 = vmatpush.msra.mxu0 %v230
    %1843 = vmatmul.f32.gmra.mxu0 %v1825
    %v1844 = vpop.f32.mrf.mxu0
    %v1845 = vadd.f32 0.0, %v1844
    %1846 = vdwg.mxu0
    %v1848 = vsel %vm1218, %v1551, 0
    %1850 = vmatpush.msra.mxu0 0.0
    %1851 = vmatpush.msra.mxu0 0.0
    %1852 = vmatpush.msra.mxu0 0.0
    %1853 = vmatpush.msra.mxu0 0.0
    %1854 = vmatpush.msra.mxu0 0.0
    %1855 = vmatpush.msra.mxu0 0.0
    %1856 = vmatpush.msra.mxu0 0.0
    %1857 = vmatpush.msra.mxu0 0.0
    %1858 = vmatpush.msra.mxu0 0.0
    %1859 = vmatpush.msra.mxu0 0.0
    %1860 = vmatpush.msra.mxu0 0.0
    %1861 = vmatpush.msra.mxu0 0.0
    %1862 = vmatpush.msra.mxu0 0.0
    %1863 = vmatpush.msra.mxu0 0.0
    %1864 = vmatpush.msra.mxu0 0.0
    %1865 = vmatpush.msra.mxu0 %v233
    %1866 = vmatmul.f32.gmra.mxu0 %v1848
    %v1867 = vpop.f32.mrf.mxu0
    %v1868 = vadd.f32 0.0, %v1867
    %1869 = vdwg.mxu0
    %v1871 = vsel %vm1218, %v1552, 0
    %1873 = vmatpush.msra.mxu0 0.0
    %1874 = vmatpush.msra.mxu0 0.0
    %1875 = vmatpush.msra.mxu0 0.0
    %1876 = vmatpush.msra.mxu0 0.0
    %1877 = vmatpush.msra.mxu0 0.0
    %1878 = vmatpush.msra.mxu0 0.0
    %1879 = vmatpush.msra.mxu0 0.0
    %1880 = vmatpush.msra.mxu0 0.0
    %1881 = vmatpush.msra.mxu0 0.0
    %1882 = vmatpush.msra.mxu0 0.0
    %1883 = vmatpush.msra.mxu0 0.0
    %1884 = vmatpush.msra.mxu0 0.0
    %1885 = vmatpush.msra.mxu0 0.0
    %1886 = vmatpush.msra.mxu0 0.0
    %1887 = vmatpush.msra.mxu0 0.0
    %1888 = vmatpush.msra.mxu0 %v235
    %1889 = vmatmul.f32.gmra.mxu0 %v1871
    %v1890 = vpop.f32.mrf.mxu0
    %v1891 = vadd.f32 0.0, %v1890
    %1892 = vdwg.mxu0
    %v1894 = vsel %vm1218, %v1553, 0
    %1896 = vmatpush.msra.mxu0 0.0
    %1897 = vmatpush.msra.mxu0 0.0
    %1898 = vmatpush.msra.mxu0 0.0
    %1899 = vmatpush.msra.mxu0 0.0
    %1900 = vmatpush.msra.mxu0 0.0
    %1901 = vmatpush.msra.mxu0 0.0
    %1902 = vmatpush.msra.mxu0 0.0
    %1903 = vmatpush.msra.mxu0 0.0
    %1904 = vmatpush.msra.mxu0 0.0
    %1905 = vmatpush.msra.mxu0 0.0
    %1906 = vmatpush.msra.mxu0 0.0
    %1907 = vmatpush.msra.mxu0 0.0
    %1908 = vmatpush.msra.mxu0 0.0
    %1909 = vmatpush.msra.mxu0 0.0
    %1910 = vmatpush.msra.mxu0 0.0
    %1911 = vmatpush.msra.mxu0 %v238
    %1912 = vmatmul.f32.gmra.mxu0 %v1894
    %v1913 = vpop.f32.mrf.mxu0
    %v1914 = vadd.f32 0.0, %v1913
    %1915 = vdwg.mxu0
    %v1917 = vsel %vm1218, %v1554, 0
    %1919 = vmatpush.msra.mxu0 0.0
    %1920 = vmatpush.msra.mxu0 0.0
    %1921 = vmatpush.msra.mxu0 0.0
    %1922 = vmatpush.msra.mxu0 0.0
    %1923 = vmatpush.msra.mxu0 0.0
    %1924 = vmatpush.msra.mxu0 0.0
    %1925 = vmatpush.msra.mxu0 0.0
    %1926 = vmatpush.msra.mxu0 0.0
    %1927 = vmatpush.msra.mxu0 0.0
    %1928 = vmatpush.msra.mxu0 0.0
    %1929 = vmatpush.msra.mxu0 0.0
    %1930 = vmatpush.msra.mxu0 0.0
    %1931 = vmatpush.msra.mxu0 0.0
    %1932 = vmatpush.msra.mxu0 0.0
    %1933 = vmatpush.msra.mxu0 0.0
    %1934 = vmatpush.msra.mxu0 %v240
    %1935 = vmatmul.f32.gmra.mxu0 %v1917
    %v1936 = vpop.f32.mrf.mxu0
    %v1937 = vadd.f32 0.0, %v1936
    %1938 = vdwg.mxu0
    %v1940 = vsel %vm1218, %v1555, 0
    %1942 = vmatpush.msra.mxu0 0.0
    %1943 = vmatpush.msra.mxu0 0.0
    %1944 = vmatpush.msra.mxu0 0.0
    %1945 = vmatpush.msra.mxu0 0.0
    %1946 = vmatpush.msra.mxu0 0.0
    %1947 = vmatpush.msra.mxu0 0.0
    %1948 = vmatpush.msra.mxu0 0.0
    %1949 = vmatpush.msra.mxu0 0.0
    %1950 = vmatpush.msra.mxu0 0.0
    %1951 = vmatpush.msra.mxu0 0.0
    %1952 = vmatpush.msra.mxu0 0.0
    %1953 = vmatpush.msra.mxu0 0.0
    %1954 = vmatpush.msra.mxu0 0.0
    %1955 = vmatpush.msra.mxu0 0.0
    %1956 = vmatpush.msra.mxu0 0.0
    %1957 = vmatpush.msra.mxu0 %v243
    %1958 = vmatmul.f32.gmra.mxu0 %v1940
    %v1959 = vpop.f32.mrf.mxu0
    %v1960 = vadd.f32 0.0, %v1959
    %1961 = vdwg.mxu0
    %v1963 = vsel %vm1218, %v1556, 0
    %1965 = vmatpush.msra.mxu0 0.0
    %1966 = vmatpush.msra.mxu0 0.0
    %1967 = vmatpush.msra.mxu0 0.0
    %1968 = vmatpush.msra.mxu0 0.0
    %1969 = vmatpush.msra.mxu0 0.0
    %1970 = vmatpush.msra.mxu0 0.0
    %1971 = vmatpush.msra.mxu0 0.0
    %1972 = vmatpush.msra.mxu0 0.0
    %1973 = vmatpush.msra.mxu0 0.0
    %1974 = vmatpush.msra.mxu0 0.0
    %1975 = vmatpush.msra.mxu0 0.0
    %1976 = vmatpush.msra.mxu0 0.0
    %1977 = vmatpush.msra.mxu0 0.0
    %1978 = vmatpush.msra.mxu0 0.0
    %1979 = vmatpush.msra.mxu0 0.0
    %1980 = vmatpush.msra.mxu0 %v245
    %1981 = vmatmul.f32.gmra.mxu0 %v1963
    %v1982 = vpop.f32.mrf.mxu0
    %v1983 = vadd.f32 0.0, %v1982
    %1984 = vdwg.mxu0
    %v1986 = vsel %vm1218, %v1557, 0
    %1988 = vmatpush.msra.mxu0 0.0
    %1989 = vmatpush.msra.mxu0 0.0
    %1990 = vmatpush.msra.mxu0 0.0
    %1991 = vmatpush.msra.mxu0 0.0
    %1992 = vmatpush.msra.mxu0 0.0
    %1993 = vmatpush.msra.mxu0 0.0
    %1994 = vmatpush.msra.mxu0 0.0
    %1995 = vmatpush.msra.mxu0 0.0
    %1996 = vmatpush.msra.mxu0 0.0
    %1997 = vmatpush.msra.mxu0 0.0
    %1998 = vmatpush.msra.mxu0 0.0
    %1999 = vmatpush.msra.mxu0 0.0
    %2000 = vmatpush.msra.mxu0 0.0
    %2001 = vmatpush.msra.mxu0 0.0
    %2002 = vmatpush.msra.mxu0 0.0
    %2003 = vmatpush.msra.mxu0 %v248
    %2004 = vmatmul.f32.gmra.mxu0 %v1986
    %v2005 = vpop.f32.mrf.mxu0
    %v2006 = vadd.f32 0.0, %v2005
    %2007 = vdwg.mxu0
    %v2009 = vsel %vm1218, %v1558, 0
    %2011 = vmatpush.msra.mxu0 0.0
    %2012 = vmatpush.msra.mxu0 0.0
    %2013 = vmatpush.msra.mxu0 0.0
    %2014 = vmatpush.msra.mxu0 0.0
    %2015 = vmatpush.msra.mxu0 0.0
    %2016 = vmatpush.msra.mxu0 0.0
    %2017 = vmatpush.msra.mxu0 0.0
    %2018 = vmatpush.msra.mxu0 0.0
    %2019 = vmatpush.msra.mxu0 0.0
    %2020 = vmatpush.msra.mxu0 0.0
    %2021 = vmatpush.msra.mxu0 0.0
    %2022 = vmatpush.msra.mxu0 0.0
    %2023 = vmatpush.msra.mxu0 0.0
    %2024 = vmatpush.msra.mxu0 0.0
    %2025 = vmatpush.msra.mxu0 0.0
    %2026 = vmatpush.msra.mxu0 %v250
    %2027 = vmatmul.f32.gmra.mxu0 %v2009
    %v2028 = vpop.f32.mrf.mxu0
    %v2029 = vadd.f32 0.0, %v2028
    %2030 = vdwg.mxu0
    %v2032 = vsel %vm1218, %v1559, 0
    %2034 = vmatpush.msra.mxu0 0.0
    %2035 = vmatpush.msra.mxu0 0.0
    %2036 = vmatpush.msra.mxu0 0.0
    %2037 = vmatpush.msra.mxu0 0.0
    %2038 = vmatpush.msra.mxu0 0.0
    %2039 = vmatpush.msra.mxu0 0.0
    %2040 = vmatpush.msra.mxu0 0.0
    %2041 = vmatpush.msra.mxu0 0.0
    %2042 = vmatpush.msra.mxu0 0.0
    %2043 = vmatpush.msra.mxu0 0.0
    %2044 = vmatpush.msra.mxu0 0.0
    %2045 = vmatpush.msra.mxu0 0.0
    %2046 = vmatpush.msra.mxu0 0.0
    %2047 = vmatpush.msra.mxu0 0.0
    %2048 = vmatpush.msra.mxu0 0.0
    %2049 = vmatpush.msra.mxu0 %v253
    %2050 = vmatmul.f32.gmra.mxu0 %v2032
    %v2051 = vpop.f32.mrf.mxu0
    %v2052 = vadd.f32 0.0, %v2051
    %2053 = vdwg.mxu0
    %v2055 = vsel %vm1218, %v1560, 0
    %2057 = vmatpush.msra.mxu0 0.0
    %2058 = vmatpush.msra.mxu0 0.0
    %2059 = vmatpush.msra.mxu0 0.0
    %2060 = vmatpush.msra.mxu0 0.0
    %2061 = vmatpush.msra.mxu0 0.0
    %2062 = vmatpush.msra.mxu0 0.0
    %2063 = vmatpush.msra.mxu0 0.0
    %2064 = vmatpush.msra.mxu0 0.0
    %2065 = vmatpush.msra.mxu0 0.0
    %2066 = vmatpush.msra.mxu0 0.0
    %2067 = vmatpush.msra.mxu0 0.0
    %2068 = vmatpush.msra.mxu0 0.0
    %2069 = vmatpush.msra.mxu0 0.0
    %2070 = vmatpush.msra.mxu0 0.0
    %2071 = vmatpush.msra.mxu0 0.0
    %2072 = vmatpush.msra.mxu0 %v255
    %2073 = vmatmul.f32.gmra.mxu0 %v2055
    %v2074 = vpop.f32.mrf.mxu0
    %v2075 = vadd.f32 0.0, %v2074
    %2076 = vdwg.mxu0
    %v2078 = vsel %vm1218, %v1561, 0
    %2080 = vmatpush.msra.mxu0 0.0
    %2081 = vmatpush.msra.mxu0 0.0
    %2082 = vmatpush.msra.mxu0 0.0
    %2083 = vmatpush.msra.mxu0 0.0
    %2084 = vmatpush.msra.mxu0 0.0
    %2085 = vmatpush.msra.mxu0 0.0
    %2086 = vmatpush.msra.mxu0 0.0
    %2087 = vmatpush.msra.mxu0 0.0
    %2088 = vmatpush.msra.mxu0 0.0
    %2089 = vmatpush.msra.mxu0 0.0
    %2090 = vmatpush.msra.mxu0 0.0
    %2091 = vmatpush.msra.mxu0 0.0
    %2092 = vmatpush.msra.mxu0 0.0
    %2093 = vmatpush.msra.mxu0 0.0
    %2094 = vmatpush.msra.mxu0 0.0
    %2095 = vmatpush.msra.mxu0 %v258
    %2096 = vmatmul.f32.gmra.mxu0 %v2078
    %v2097 = vpop.f32.mrf.mxu0
    %v2098 = vadd.f32 0.0, %v2097
    %2099 = vdwg.mxu0
    %v2101 = vsel %vm1218, %v1562, 0
    %2103 = vmatpush.msra.mxu0 0.0
    %2104 = vmatpush.msra.mxu0 0.0
    %2105 = vmatpush.msra.mxu0 0.0
    %2106 = vmatpush.msra.mxu0 0.0
    %2107 = vmatpush.msra.mxu0 0.0
    %2108 = vmatpush.msra.mxu0 0.0
    %2109 = vmatpush.msra.mxu0 0.0
    %2110 = vmatpush.msra.mxu0 0.0
    %2111 = vmatpush.msra.mxu0 0.0
    %2112 = vmatpush.msra.mxu0 0.0
    %2113 = vmatpush.msra.mxu0 0.0
    %2114 = vmatpush.msra.mxu0 0.0
    %2115 = vmatpush.msra.mxu0 0.0
    %2116 = vmatpush.msra.mxu0 0.0
    %2117 = vmatpush.msra.mxu0 0.0
    %2118 = vmatpush.msra.mxu0 %v260
    %2119 = vmatmul.f32.gmra.mxu0 %v2101
    %v2120 = vpop.f32.mrf.mxu0
    %v2121 = vadd.f32 0.0, %v2120
    %2122 = vdwg.mxu0
    %v2124 = vsel %vm1218, %v1563, 0
    %2126 = vmatpush.msra.mxu0 0.0
    %2127 = vmatpush.msra.mxu0 0.0
    %2128 = vmatpush.msra.mxu0 0.0
    %2129 = vmatpush.msra.mxu0 0.0
    %2130 = vmatpush.msra.mxu0 0.0
    %2131 = vmatpush.msra.mxu0 0.0
    %2132 = vmatpush.msra.mxu0 0.0
    %2133 = vmatpush.msra.mxu0 0.0
    %2134 = vmatpush.msra.mxu0 0.0
    %2135 = vmatpush.msra.mxu0 0.0
    %2136 = vmatpush.msra.mxu0 0.0
    %2137 = vmatpush.msra.mxu0 0.0
    %2138 = vmatpush.msra.mxu0 0.0
    %2139 = vmatpush.msra.mxu0 0.0
    %2140 = vmatpush.msra.mxu0 0.0
    %2141 = vmatpush.msra.mxu0 %v263
    %2142 = vmatmul.f32.gmra.mxu0 %v2124
    %v2143 = vpop.f32.mrf.mxu0
    %v2144 = vadd.f32 0.0, %v2143
    %2145 = vdwg.mxu0
    %v2147 = vsel %vm1218, %v1564, 0
    %2149 = vmatpush.msra.mxu0 0.0
    %2150 = vmatpush.msra.mxu0 0.0
    %2151 = vmatpush.msra.mxu0 0.0
    %2152 = vmatpush.msra.mxu0 0.0
    %2153 = vmatpush.msra.mxu0 0.0
    %2154 = vmatpush.msra.mxu0 0.0
    %2155 = vmatpush.msra.mxu0 0.0
    %2156 = vmatpush.msra.mxu0 0.0
    %2157 = vmatpush.msra.mxu0 0.0
    %2158 = vmatpush.msra.mxu0 0.0
    %2159 = vmatpush.msra.mxu0 0.0
    %2160 = vmatpush.msra.mxu0 0.0
    %2161 = vmatpush.msra.mxu0 0.0
    %2162 = vmatpush.msra.mxu0 0.0
    %2163 = vmatpush.msra.mxu0 0.0
    %2164 = vmatpush.msra.mxu0 %v265
    %2165 = vmatmul.f32.gmra.mxu0 %v2147
    %v2166 = vpop.f32.mrf.mxu0
    %v2167 = vadd.f32 0.0, %v2166
    %2168 = vdwg.mxu0
    %v2170 = vsel %vm1218, %v1565, 0
    %2172 = vmatpush.msra.mxu0 0.0
    %2173 = vmatpush.msra.mxu0 0.0
    %2174 = vmatpush.msra.mxu0 0.0
    %2175 = vmatpush.msra.mxu0 0.0
    %2176 = vmatpush.msra.mxu0 0.0
    %2177 = vmatpush.msra.mxu0 0.0
    %2178 = vmatpush.msra.mxu0 0.0
    %2179 = vmatpush.msra.mxu0 0.0
    %2180 = vmatpush.msra.mxu0 0.0
    %2181 = vmatpush.msra.mxu0 0.0
    %2182 = vmatpush.msra.mxu0 0.0
    %2183 = vmatpush.msra.mxu0 0.0
    %2184 = vmatpush.msra.mxu0 0.0
    %2185 = vmatpush.msra.mxu0 0.0
    %2186 = vmatpush.msra.mxu0 0.0
    %2187 = vmatpush.msra.mxu0 %v268
    %2188 = vmatmul.f32.gmra.mxu0 %v2170
    %v2189 = vpop.f32.mrf.mxu0
    %v2190 = vadd.f32 0.0, %v2189
    %2191 = vdwg.mxu0
    %v2193 = vsel %vm1218, %v1566, 0
    %2195 = vmatpush.msra.mxu0 0.0
    %2196 = vmatpush.msra.mxu0 0.0
    %2197 = vmatpush.msra.mxu0 0.0
    %2198 = vmatpush.msra.mxu0 0.0
    %2199 = vmatpush.msra.mxu0 0.0
    %2200 = vmatpush.msra.mxu0 0.0
    %2201 = vmatpush.msra.mxu0 0.0
    %2202 = vmatpush.msra.mxu0 0.0
    %2203 = vmatpush.msra.mxu0 0.0
    %2204 = vmatpush.msra.mxu0 0.0
    %2205 = vmatpush.msra.mxu0 0.0
    %2206 = vmatpush.msra.mxu0 0.0
    %2207 = vmatpush.msra.mxu0 0.0
    %2208 = vmatpush.msra.mxu0 0.0
    %2209 = vmatpush.msra.mxu0 0.0
    %2210 = vmatpush.msra.mxu0 %v270
    %2211 = vmatmul.f32.gmra.mxu0 %v2193
    %v2212 = vpop.f32.mrf.mxu0
    %v2213 = vadd.f32 0.0, %v2212
    %2214 = vdwg.mxu0
    %v2216 = vsel %vm1218, %v1567, 0
    %2218 = vmatpush.msra.mxu0 0.0
    %2219 = vmatpush.msra.mxu0 0.0
    %2220 = vmatpush.msra.mxu0 0.0
    %2221 = vmatpush.msra.mxu0 0.0
    %2222 = vmatpush.msra.mxu0 0.0
    %2223 = vmatpush.msra.mxu0 0.0
    %2224 = vmatpush.msra.mxu0 0.0
    %2225 = vmatpush.msra.mxu0 0.0
    %2226 = vmatpush.msra.mxu0 0.0
    %2227 = vmatpush.msra.mxu0 0.0
    %2228 = vmatpush.msra.mxu0 0.0
    %2229 = vmatpush.msra.mxu0 0.0
    %2230 = vmatpush.msra.mxu0 0.0
    %2231 = vmatpush.msra.mxu0 0.0
    %2232 = vmatpush.msra.mxu0 0.0
    %2233 = vmatpush.msra.mxu0 %v273
    %2234 = vmatmul.f32.gmra.mxu0 %v2216
    %v2235 = vpop.f32.mrf.mxu0
    %v2236 = vadd.f32 0.0, %v2235
    %2237 = vdwg.mxu0
    %v2239 = vsel %vm1218, %v1568, 0
    %2241 = vmatpush.msra.mxu0 0.0
    %2242 = vmatpush.msra.mxu0 0.0
    %2243 = vmatpush.msra.mxu0 0.0
    %2244 = vmatpush.msra.mxu0 0.0
    %2245 = vmatpush.msra.mxu0 0.0
    %2246 = vmatpush.msra.mxu0 0.0
    %2247 = vmatpush.msra.mxu0 0.0
    %2248 = vmatpush.msra.mxu0 0.0
    %2249 = vmatpush.msra.mxu0 0.0
    %2250 = vmatpush.msra.mxu0 0.0
    %2251 = vmatpush.msra.mxu0 0.0
    %2252 = vmatpush.msra.mxu0 0.0
    %2253 = vmatpush.msra.mxu0 0.0
    %2254 = vmatpush.msra.mxu0 0.0
    %2255 = vmatpush.msra.mxu0 0.0
    %2256 = vmatpush.msra.mxu0 %v275
    %2257 = vmatmul.f32.gmra.mxu0 %v2239
    %v2258 = vpop.f32.mrf.mxu0
    %v2259 = vadd.f32 0.0, %v2258
    %2260 = vdwg.mxu0
    %v2262 = vsel %vm1218, %v1569, 0
    %2264 = vmatpush.msra.mxu0 0.0
    %2265 = vmatpush.msra.mxu0 0.0
    %2266 = vmatpush.msra.mxu0 0.0
    %2267 = vmatpush.msra.mxu0 0.0
    %2268 = vmatpush.msra.mxu0 0.0
    %2269 = vmatpush.msra.mxu0 0.0
    %2270 = vmatpush.msra.mxu0 0.0
    %2271 = vmatpush.msra.mxu0 0.0
    %2272 = vmatpush.msra.mxu0 0.0
    %2273 = vmatpush.msra.mxu0 0.0
    %2274 = vmatpush.msra.mxu0 0.0
    %2275 = vmatpush.msra.mxu0 0.0
    %2276 = vmatpush.msra.mxu0 0.0
    %2277 = vmatpush.msra.mxu0 0.0
    %2278 = vmatpush.msra.mxu0 0.0
    %2279 = vmatpush.msra.mxu0 %v278
    %2280 = vmatmul.f32.gmra.mxu0 %v2262
    %v2281 = vpop.f32.mrf.mxu0
    %v2282 = vadd.f32 0.0, %v2281
    %2283 = vdwg.mxu0
    %v2285 = vsel %vm1218, %v1570, 0
    %2287 = vmatpush.msra.mxu0 0.0
    %2288 = vmatpush.msra.mxu0 0.0
    %2289 = vmatpush.msra.mxu0 0.0
    %2290 = vmatpush.msra.mxu0 0.0
    %2291 = vmatpush.msra.mxu0 0.0
    %2292 = vmatpush.msra.mxu0 0.0
    %2293 = vmatpush.msra.mxu0 0.0
    %2294 = vmatpush.msra.mxu0 0.0
    %2295 = vmatpush.msra.mxu0 0.0
    %2296 = vmatpush.msra.mxu0 0.0
    %2297 = vmatpush.msra.mxu0 0.0
    %2298 = vmatpush.msra.mxu0 0.0
    %2299 = vmatpush.msra.mxu0 0.0
    %2300 = vmatpush.msra.mxu0 0.0
    %2301 = vmatpush.msra.mxu0 0.0
    %2302 = vmatpush.msra.mxu0 %v280
    %2303 = vmatmul.f32.gmra.mxu0 %v2285
    %v2304 = vpop.f32.mrf.mxu0
    %v2305 = vadd.f32 0.0, %v2304
    %2306 = vdwg.mxu0
    %2307 = vst [vmem:[#allocation2] sm:$0xff] %v1592
    %2308 = vst [vmem:[#allocation2 + $0x8] sm:$0xff] %v1615
    %2309 = vst [vmem:[#allocation2 + $0x10] sm:$0xff] %v1638
    %2310 = vst [vmem:[#allocation2 + $0x18] sm:$0xff] %v1661
    %2311 = vst [vmem:[#allocation2 + $0x20] sm:$0xff] %v1684
    %2312 = vst [vmem:[#allocation2 + $0x28] sm:$0xff] %v1707
    %2313 = vst [vmem:[#allocation2 + $0x30] sm:$0xff] %v1730
    %2314 = vst [vmem:[#allocation2 + $0x38] sm:$0xff] %v1753
    %2315 = vst [vmem:[#allocation2 + $0x40] sm:$0xff] %v1776
    %2316 = vst [vmem:[#allocation2 + $0x48] sm:$0xff] %v1799
    %2317 = vst [vmem:[#allocation2 + $0x50] sm:$0xff] %v1822
    %2318 = vst [vmem:[#allocation2 + $0x58] sm:$0xff] %v1845
    %2319 = vst [vmem:[#allocation2 + $0x60] sm:$0xff] %v1868
    %2320 = vst [vmem:[#allocation2 + $0x68] sm:$0xff] %v1891
    %2321 = vst [vmem:[#allocation2 + $0x70] sm:$0xff] %v1914
    %2322 = vst [vmem:[#allocation2 + $0x78] sm:$0xff] %v1937
    %2323 = vst [vmem:[#allocation2 + $0x80] sm:$0xff] %v1960
    %2324 = vst [vmem:[#allocation2 + $0x88] sm:$0xff] %v1983
    %2325 = vst [vmem:[#allocation2 + $0x90] sm:$0xff] %v2006
    %2326 = vst [vmem:[#allocation2 + $0x98] sm:$0xff] %v2029
    %2327 = vst [vmem:[#allocation2 + $0xa0] sm:$0xff] %v2052
    %2328 = vst [vmem:[#allocation2 + $0xa8] sm:$0xff] %v2075
    %2329 = vst [vmem:[#allocation2 + $0xb0] sm:$0xff] %v2098
    %2330 = vst [vmem:[#allocation2 + $0xb8] sm:$0xff] %v2121
    %2331 = vst [vmem:[#allocation2 + $0xc0] sm:$0xff] %v2144
    %2332 = vst [vmem:[#allocation2 + $0xc8] sm:$0xff] %v2167
    %2333 = vst [vmem:[#allocation2 + $0xd0] sm:$0xff] %v2190
    %2334 = vst [vmem:[#allocation2 + $0xd8] sm:$0xff] %v2213
    %2335 = vst [vmem:[#allocation2 + $0xe0] sm:$0xff] %v2236
    %2336 = vst [vmem:[#allocation2 + $0xe8] sm:$0xff] %v2259
    %2337 = vst [vmem:[#allocation2 + $0xf0] sm:$0xff] %v2282
    %2338 = vst [vmem:[#allocation2 + $0xf8] sm:$0xff] %v2305
    // Predicated region
    $region14: #{tpu_custom_call.1} parent=1 // pred_check
      _
    $region15: #{tpu_custom_call.1} parent=1 // pred_check_branch
      %2340 = sbr.rel (0) target = $region17
    $region16: #{tpu_custom_call.1} parent=1 // pred_region
      %2342 = vsyncadd [#allocation3], 0
      %s2343 = sshll.u32 [#allocation2], 4
      %s2344 = int_to_ptr.vmem [resolvable:$true] %s2343
      %s2345 = sshll.u32 %s3, 4
      %s2346 = int_to_ptr.hbm [resolvable:$true] %s2345
      %2351 = dma.vmem_to_hbm [thread:$0]  %s2344, 4096, %s2346, [#allocation3], 128, 128, 8
    $region17: #{tpu_custom_call.1} parent=1 // pred_fallthru
      _
    // Predicated region
    $region18: #{tpu_custom_call.1} parent=1 // pred_check
      _
    $region19: #{tpu_custom_call.1} parent=1 // pred_check_branch
      %2353 = sbr.rel (0) target = $region21
    $region20: #{tpu_custom_call.1} parent=1 // pred_region
      %2355 = dma.done [#allocation3], 4096
    $region21: #{tpu_custom_call.1} parent=1 // pred_fallthru
      _
    %2356 = vsyncpa [#allocation3], 1

</llo_original>
